<compile_context>
chip_gen: v7x
topology: tpu7x:2x2x1
jax: 0.10.0
libtpu: 0.0.40
codegen_flags: <defaults>
</compile_context>

<pallas_src>
import jax
import jax.numpy as jnp
from jax import lax
from jax.experimental import pallas as pl
from jax.experimental.pallas import tpu as pltpu

_KH = _KW = 5
_STRIDE = 2
_PAD = 2

_TARGET_LANES = 512          # ~output positions per row-chunk (acc = O x 512 f32 = 4 vregs)
_TARGET_STEP_BYTES = 512 * 1024  # per-grid-step HBM traffic target when batching images


def _make_kernel(tap_list, *, Nb, C, O, Mt, R):
    """Fused conv(5x5,s2) + bias + ReLU for one (image-group, row-chunk) step."""

    def kernel(x_ref, w_ref, b_ref, o_ref):
        # x_ref: (Nb, 4, C, Lflat) bf16 - polyphase planes, lane dim = flat h*Wh+w
        # w_ref: (O, 25*C)         bf16 - packed per-tap weights, tap t at cols [t*C,(t+1)*C)
        # b_ref: (O, 1)            f32
        # o_ref: (Nb, O, Mo)       f32  - full per-image padded output (resident across r)
        col0 = 0 if R == 1 else pl.program_id(1) * Mt  # static when un-chunked
        bias = b_ref[...]                              # (O, 1) f32
        for b in range(Nb):
            acc = jnp.zeros((O, Mt), jnp.float32)
            # 25 lane-slice reads of the VMEM-resident planes + 25 accumulating dots.
            for t, (ph, off) in enumerate(tap_list):
                xs = x_ref[b, ph, :, pl.ds(col0 + off, Mt)]   # (C, Mt) bf16, no transpose
                wt = w_ref[:, t * C:(t + 1) * C]              # (O, C)  bf16, static slice
                acc = acc + jnp.dot(wt, xs, preferred_element_type=jnp.float32)
            # Bias + ReLU in f32 on the VPU, store this chunk's columns.
            o_ref[b, :, pl.ds(col0, Mt)] = jnp.maximum(acc + bias, 0.0)

    return kernel


def down_conv_layer(x, weight, bias, *, compute_dtype=jnp.bfloat16):
    """ReLU(Conv2d(x; kernel=5, stride=2, padding=2)), PyTorch NCHW semantics.

    x:      (N, C, H, W)  float32
    weight: (O, C, 5, 5)  float32
    bias:   (O,)          float32
    returns (N, O, Ho, Wo) float32
    """
    N, C, H, W = x.shape
    O = weight.shape[0]

    Ho = (H + 2 * _PAD - _KH) // _STRIDE + 1
    Wo = (W + 2 * _PAD - _KW) // _STRIDE + 1

    # ---- tiling geometry (all static) --------------------------------------
    Wh = Wo + 2                                   # plane width: widest tap window, no lane padding
    Tr = max(1, min(Ho, _TARGET_LANES // Wh))     # output rows per chunk (bounds acc vreg use)
    R = -(-Ho // Tr)                              # row chunks per image
    Hh = R * Tr + 3                               # plane height incl. flat-slice headroom
    Lflat = Hh * Wh                               # flattened phase-plane length (lane dim)
    Mt = Tr * Wh                                  # output positions per chunk (incl. garbage cols)
    Mo = R * Mt                                   # padded output positions per image

    # Images per grid step: batch small images to amortize per-step overhead, but
    # keep >= 2 groups so both v7x cores / the pipeline have >= 2 steps.
    per_img_bytes = 4 * C * Lflat * 2 + O * Mo * 4
    Nb = max(1, min(N // 2, 8, _TARGET_STEP_BYTES // max(per_img_bytes, 1)))
    G = -(-N // Nb)
    Np = G * Nb

    # ---- glue (1x input bytes): zero-pad + polyphase repack, lane-major -----
    x_pad = jnp.pad(
        x,
        ((0, 0), (0, 0),
         (_PAD, 2 * Hh - H - _PAD),
         (_PAD, 2 * Wh - W - _PAD)))
    # (N,C,2Hh,2Wh) -> (N,C,Hh,2,Wh,2) -> (N, h2, w2, C, Hh, Wh) -> (N, 4, C, Lflat)
    p = (x_pad.reshape(N, C, Hh, 2, Wh, 2)
         .transpose(0, 3, 5, 1, 2, 4)
         .reshape(N, 4, C, Lflat)
         .astype(compute_dtype))
    if Np > N:
        p = jnp.pad(p, ((0, Np - N), (0, 0), (0, 0), (0, 0)))

    # weights: (O, C, KH, KW) -> packed (O, 25*C), tap t = kh*KW + kw at cols [t*C,(t+1)*C)
    w_packed = (weight.transpose(2, 3, 0, 1)          # (KH, KW, O, C)
                .reshape(_KH * _KW, O, C)
                .transpose(1, 0, 2)                   # (O, 25, C)
                .reshape(O, _KH * _KW * C)
                .astype(compute_dtype))
    b2 = bias.reshape(O, 1).astype(jnp.float32)

    # Static tap geometry: (phase, flat offset within the plane) per (kh, kw).
    tap_list = tuple(
        ((kh % 2) * 2 + (kw % 2), (kh // 2) * Wh + (kw // 2))
        for kh in range(_KH) for kw in range(_KW))

    kernel = _make_kernel(tap_list, Nb=Nb, C=C, O=O, Mt=Mt, R=R)

    # VMEM budget: 2x double-buffered input block + 2x output block + weights + slack.
    in_blk = Nb * 4 * C * Lflat * 2
    out_blk = Nb * O * Mo * 4
    vmem_limit = min(48 * 1024 * 1024,
                     max(32 * 1024 * 1024,
                         3 * (in_blk + out_blk) + 2 * 1024 * 1024))

    cost = pl.CostEstimate(
        flops=2 * N * O * C * _KH * _KW * Ho * Wo,
        transcendentals=0,
        bytes_accessed=(Np * 4 * C * Lflat * 2      # bf16 input planes
                        + O * _KH * _KW * C * 2     # bf16 weights
                        + O * 4                     # f32 bias
                        + Np * O * Mo * 4))         # f32 output

    out = pl.pallas_call(
        kernel,
        out_shape=jax.ShapeDtypeStruct((Np, O, Mo), jnp.float32),
        grid=(G, R),  # image groups (parallel) x row chunks (arbitrary, minor)
        in_specs=[
            # Streamed input: full planes per image group, resident across row chunks.
            pl.BlockSpec((Nb, 4, C, Lflat), lambda g, r: (g, 0, 0, 0)),
            # Resident packed weights / bias.
            pl.BlockSpec((O, _KH * _KW * C), lambda g, r: (0, 0)),
            pl.BlockSpec((O, 1), lambda g, r: (0, 0)),
        ],
        # Output block revisited across the row-chunk axis -> written back once per group.
        out_specs=pl.BlockSpec((Nb, O, Mo), lambda g, r: (g, 0, 0)),
        compiler_params=pltpu.CompilerParams(
            dimension_semantics=("parallel", "arbitrary"),
            vmem_limit_bytes=vmem_limit,
        ),
        cost_estimate=cost,
    )(p, w_packed, b2)

    # (Np, O, Mo) is already NCHW element order: view as (Np, O, R*Tr, Wh) and
    # drop padded images / garbage rows / garbage columns.  No transpose pass.
    return out.reshape(Np, O, R * Tr, Wh)[:N, :, :Ho, :Wo]


# ----------------------------------------------------------------------------
# Reference (pure JAX / XLA conv) for correctness check
# ----------------------------------------------------------------------------
def _reference(x, weight, bias, compute_dtype=None):
    xr = x if compute_dtype is None else x.astype(compute_dtype)
    wr = weight if compute_dtype is None else weight.astype(compute_dtype)
    y = lax.conv_general_dilated(
        xr, wr,
        window_strides=(_STRIDE, _STRIDE),
        padding=((_PAD, _PAD), (_PAD, _PAD)),
        dimension_numbers=("NCHW", "OIHW", "NCHW"),
        preferred_element_type=jnp.float32)
    return jnp.maximum(y + bias[None, :, None, None], 0.0)


if __name__ == "__main__":
    # Small shapes consistent with the module: input_depth=4, output_depth=8, 16x16.
    N, C, H, W = 2, 4, 16, 16
    O = 8

    key = jax.random.PRNGKey(0)
    kx, kw, kb = jax.random.split(key, 3)

    x = jax.random.normal(kx, (N, C, H, W), dtype=jnp.float32)
    fan_in = C * 5 * 5
    bound = 1.0 / (fan_in ** 0.5)
    weight = jax.random.uniform(kw, (O, C, 5, 5), jnp.float32, -bound, bound)
    bias = jax.random.uniform(kb, (O,), jnp.float32, -bound, bound)

    out = jax.block_until_ready(jax.jit(down_conv_layer)(x, weight, bias))
    assert out.shape == (N, O, H // 2, W // 2), out.shape

    # Tight check vs. a reference using the same bf16 inputs / f32 accumulation.
    ref16 = jax.block_until_ready(_reference(x, weight, bias, jnp.bfloat16))
    err16 = float(jnp.max(jnp.abs(out - ref16)))
    assert jnp.allclose(out, ref16, atol=1e-4, rtol=1e-4), err16

    # Loose sanity check vs. the full-f32 (PyTorch-equivalent) reference.
    ref32 = jax.block_until_ready(_reference(x, weight, bias))
    err32 = float(jnp.max(jnp.abs(out - ref32)))
    assert jnp.allclose(out, ref32, atol=5e-2, rtol=5e-2), err32

    print("KERNEL_OK")
</pallas_src>

<mosaic_0001>
module attributes {stable_mosaic.version = 11 : i64} {
  func.func @kernel(%arg0: i32, %arg1: i32, %arg2: memref<1x4x4x110xbf16, #tpu.memory_space<vmem>>, %arg3: memref<8x100xbf16, #tpu.memory_space<vmem>>, %arg4: memref<8x1xf32, #tpu.memory_space<vmem>>, %arg5: memref<1x8x80xf32, #tpu.memory_space<vmem>>) attributes {dimension_semantics = [#tpu.dimension_semantics<parallel>, #tpu.dimension_semantics<arbitrary>], iteration_bounds = array<i64: 2, 1>, scalar_prefetch = 0 : i64, scratch_operands = 0 : i64, tpu.core_type = #tpu.core_type<tc>, window_params = [{transform_indices = @transform_0, window_bounds = array<i64: 1, 4, 4, 110>}, {pipeline_mode = #tpu.pipeline_mode<synchronous>, transform_indices = @transform_1, window_bounds = array<i64: 8, 100>}, {pipeline_mode = #tpu.pipeline_mode<synchronous>, transform_indices = @transform_2, window_bounds = array<i64: 8, 1>}, {transform_indices = @transform_3, window_bounds = array<i64: 1, 8, 80>}]} {
    %c0 = arith.constant 0 : index
    %c0_0 = arith.constant 0 : index
    %0 = vector.load %arg4[%c0, %c0_0] : memref<8x1xf32, #tpu.memory_space<vmem>>, vector<8x1xf32>
    %cst = arith.constant 0.000000e+00 : f32
    %1 = vector.broadcast %cst : f32 to vector<8x80xf32>
    %c0_1 = arith.constant 0 : index
    %c0_2 = arith.constant 0 : index
    %c0_3 = arith.constant 0 : index
    %c0_4 = arith.constant 0 : index
    %2 = vector.load %arg2[%c0_1, %c0_2, %c0_3, %c0_4] : memref<1x4x4x110xbf16, #tpu.memory_space<vmem>>, vector<1x1x4x80xbf16>
    %3 = vector.shape_cast %2 : vector<1x1x4x80xbf16> to vector<4x80xbf16>
    %c0_5 = arith.constant 0 : index
    %c0_6 = arith.constant 0 : index
    %4 = vector.load %arg3[%c0_5, %c0_6] : memref<8x100xbf16, #tpu.memory_space<vmem>>, vector<8x4xbf16>
    %cst_7 = arith.constant dense<0.000000e+00> : vector<8x80xf32>
    %5 = tpu.matmul %4, %3, %cst_7 {dimension_numbers = #tpu.dot_dimension_numbers<[1], [0], [0], [1], [0, 0, 1, 1], [], []>} : vector<8x4xbf16>, vector<4x80xbf16>, vector<8x80xf32> -> vector<8x80xf32>
    %6 = arith.addf %1, %5 : vector<8x80xf32>
    %c0_8 = arith.constant 0 : index
    %c1 = arith.constant 1 : index
    %c0_9 = arith.constant 0 : index
    %c0_10 = arith.constant 0 : index
    %7 = vector.load %arg2[%c0_8, %c1, %c0_9, %c0_10] : memref<1x4x4x110xbf16, #tpu.memory_space<vmem>>, vector<1x1x4x80xbf16>
    %8 = vector.shape_cast %7 : vector<1x1x4x80xbf16> to vector<4x80xbf16>
    %c0_11 = arith.constant 0 : index
    %c4 = arith.constant 4 : index
    %9 = vector.load %arg3[%c0_11, %c4] : memref<8x100xbf16, #tpu.memory_space<vmem>>, vector<8x4xbf16>
    %cst_12 = arith.constant dense<0.000000e+00> : vector<8x80xf32>
    %10 = tpu.matmul %9, %8, %cst_12 {dimension_numbers = #tpu.dot_dimension_numbers<[1], [0], [0], [1], [0, 0, 1, 1], [], []>} : vector<8x4xbf16>, vector<4x80xbf16>, vector<8x80xf32> -> vector<8x80xf32>
    %11 = arith.addf %6, %10 : vector<8x80xf32>
    %c0_13 = arith.constant 0 : index
    %c0_14 = arith.constant 0 : index
    %c0_15 = arith.constant 0 : index
    %c1_16 = arith.constant 1 : index
    %12 = vector.load %arg2[%c0_13, %c0_14, %c0_15, %c1_16] : memref<1x4x4x110xbf16, #tpu.memory_space<vmem>>, vector<1x1x4x80xbf16>
    %13 = vector.shape_cast %12 : vector<1x1x4x80xbf16> to vector<4x80xbf16>
    %c0_17 = arith.constant 0 : index
    %c8 = arith.constant 8 : index
    %14 = vector.load %arg3[%c0_17, %c8] : memref<8x100xbf16, #tpu.memory_space<vmem>>, vector<8x4xbf16>
    %cst_18 = arith.constant dense<0.000000e+00> : vector<8x80xf32>
    %15 = tpu.matmul %14, %13, %cst_18 {dimension_numbers = #tpu.dot_dimension_numbers<[1], [0], [0], [1], [0, 0, 1, 1], [], []>} : vector<8x4xbf16>, vector<4x80xbf16>, vector<8x80xf32> -> vector<8x80xf32>
    %16 = arith.addf %11, %15 : vector<8x80xf32>
    %c0_19 = arith.constant 0 : index
    %c1_20 = arith.constant 1 : index
    %c0_21 = arith.constant 0 : index
    %c1_22 = arith.constant 1 : index
    %17 = vector.load %arg2[%c0_19, %c1_20, %c0_21, %c1_22] : memref<1x4x4x110xbf16, #tpu.memory_space<vmem>>, vector<1x1x4x80xbf16>
    %18 = vector.shape_cast %17 : vector<1x1x4x80xbf16> to vector<4x80xbf16>
    %c0_23 = arith.constant 0 : index
    %c12 = arith.constant 12 : index
    %19 = vector.load %arg3[%c0_23, %c12] : memref<8x100xbf16, #tpu.memory_space<vmem>>, vector<8x4xbf16>
    %cst_24 = arith.constant dense<0.000000e+00> : vector<8x80xf32>
    %20 = tpu.matmul %19, %18, %cst_24 {dimension_numbers = #tpu.dot_dimension_numbers<[1], [0], [0], [1], [0, 0, 1, 1], [], []>} : vector<8x4xbf16>, vector<4x80xbf16>, vector<8x80xf32> -> vector<8x80xf32>
    %21 = arith.addf %16, %20 : vector<8x80xf32>
    %c0_25 = arith.constant 0 : index
    %c0_26 = arith.constant 0 : index
    %c0_27 = arith.constant 0 : index
    %c2 = arith.constant 2 : index
    %22 = vector.load %arg2[%c0_25, %c0_26, %c0_27, %c2] : memref<1x4x4x110xbf16, #tpu.memory_space<vmem>>, vector<1x1x4x80xbf16>
    %23 = vector.shape_cast %22 : vector<1x1x4x80xbf16> to vector<4x80xbf16>
    %c0_28 = arith.constant 0 : index
    %c16 = arith.constant 16 : index
    %24 = vector.load %arg3[%c0_28, %c16] : memref<8x100xbf16, #tpu.memory_space<vmem>>, vector<8x4xbf16>
    %cst_29 = arith.constant dense<0.000000e+00> : vector<8x80xf32>
    %25 = tpu.matmul %24, %23, %cst_29 {dimension_numbers = #tpu.dot_dimension_numbers<[1], [0], [0], [1], [0, 0, 1, 1], [], []>} : vector<8x4xbf16>, vector<4x80xbf16>, vector<8x80xf32> -> vector<8x80xf32>
    %26 = arith.addf %21, %25 : vector<8x80xf32>
    %c0_30 = arith.constant 0 : index
    %c2_31 = arith.constant 2 : index
    %c0_32 = arith.constant 0 : index
    %c0_33 = arith.constant 0 : index
    %27 = vector.load %arg2[%c0_30, %c2_31, %c0_32, %c0_33] : memref<1x4x4x110xbf16, #tpu.memory_space<vmem>>, vector<1x1x4x80xbf16>
    %28 = vector.shape_cast %27 : vector<1x1x4x80xbf16> to vector<4x80xbf16>
    %c0_34 = arith.constant 0 : index
    %c20 = arith.constant 20 : index
    %29 = vector.load %arg3[%c0_34, %c20] : memref<8x100xbf16, #tpu.memory_space<vmem>>, vector<8x4xbf16>
    %cst_35 = arith.constant dense<0.000000e+00> : vector<8x80xf32>
    %30 = tpu.matmul %29, %28, %cst_35 {dimension_numbers = #tpu.dot_dimension_numbers<[1], [0], [0], [1], [0, 0, 1, 1], [], []>} : vector<8x4xbf16>, vector<4x80xbf16>, vector<8x80xf32> -> vector<8x80xf32>
    %31 = arith.addf %26, %30 : vector<8x80xf32>
    %c0_36 = arith.constant 0 : index
    %c3 = arith.constant 3 : index
    %c0_37 = arith.constant 0 : index
    %c0_38 = arith.constant 0 : index
    %32 = vector.load %arg2[%c0_36, %c3, %c0_37, %c0_38] : memref<1x4x4x110xbf16, #tpu.memory_space<vmem>>, vector<1x1x4x80xbf16>
    %33 = vector.shape_cast %32 : vector<1x1x4x80xbf16> to vector<4x80xbf16>
    %c0_39 = arith.constant 0 : index
    %c24 = arith.constant 24 : index
    %34 = vector.load %arg3[%c0_39, %c24] : memref<8x100xbf16, #tpu.memory_space<vmem>>, vector<8x4xbf16>
    %cst_40 = arith.constant dense<0.000000e+00> : vector<8x80xf32>
    %35 = tpu.matmul %34, %33, %cst_40 {dimension_numbers = #tpu.dot_dimension_numbers<[1], [0], [0], [1], [0, 0, 1, 1], [], []>} : vector<8x4xbf16>, vector<4x80xbf16>, vector<8x80xf32> -> vector<8x80xf32>
    %36 = arith.addf %31, %35 : vector<8x80xf32>
    %c0_41 = arith.constant 0 : index
    %c2_42 = arith.constant 2 : index
    %c0_43 = arith.constant 0 : index
    %c1_44 = arith.constant 1 : index
    %37 = vector.load %arg2[%c0_41, %c2_42, %c0_43, %c1_44] : memref<1x4x4x110xbf16, #tpu.memory_space<vmem>>, vector<1x1x4x80xbf16>
    %38 = vector.shape_cast %37 : vector<1x1x4x80xbf16> to vector<4x80xbf16>
    %c0_45 = arith.constant 0 : index
    %c28 = arith.constant 28 : index
    %39 = vector.load %arg3[%c0_45, %c28] : memref<8x100xbf16, #tpu.memory_space<vmem>>, vector<8x4xbf16>
    %cst_46 = arith.constant dense<0.000000e+00> : vector<8x80xf32>
    %40 = tpu.matmul %39, %38, %cst_46 {dimension_numbers = #tpu.dot_dimension_numbers<[1], [0], [0], [1], [0, 0, 1, 1], [], []>} : vector<8x4xbf16>, vector<4x80xbf16>, vector<8x80xf32> -> vector<8x80xf32>
    %41 = arith.addf %36, %40 : vector<8x80xf32>
    %c0_47 = arith.constant 0 : index
    %c3_48 = arith.constant 3 : index
    %c0_49 = arith.constant 0 : index
    %c1_50 = arith.constant 1 : index
    %42 = vector.load %arg2[%c0_47, %c3_48, %c0_49, %c1_50] : memref<1x4x4x110xbf16, #tpu.memory_space<vmem>>, vector<1x1x4x80xbf16>
    %43 = vector.shape_cast %42 : vector<1x1x4x80xbf16> to vector<4x80xbf16>
    %c0_51 = arith.constant 0 : index
    %c32 = arith.constant 32 : index
    %44 = vector.load %arg3[%c0_51, %c32] : memref<8x100xbf16, #tpu.memory_space<vmem>>, vector<8x4xbf16>
    %cst_52 = arith.constant dense<0.000000e+00> : vector<8x80xf32>
    %45 = tpu.matmul %44, %43, %cst_52 {dimension_numbers = #tpu.dot_dimension_numbers<[1], [0], [0], [1], [0, 0, 1, 1], [], []>} : vector<8x4xbf16>, vector<4x80xbf16>, vector<8x80xf32> -> vector<8x80xf32>
    %46 = arith.addf %41, %45 : vector<8x80xf32>
    %c0_53 = arith.constant 0 : index
    %c2_54 = arith.constant 2 : index
    %c0_55 = arith.constant 0 : index
    %c2_56 = arith.constant 2 : index
    %47 = vector.load %arg2[%c0_53, %c2_54, %c0_55, %c2_56] : memref<1x4x4x110xbf16, #tpu.memory_space<vmem>>, vector<1x1x4x80xbf16>
    %48 = vector.shape_cast %47 : vector<1x1x4x80xbf16> to vector<4x80xbf16>
    %c0_57 = arith.constant 0 : index
    %c36 = arith.constant 36 : index
    %49 = vector.load %arg3[%c0_57, %c36] : memref<8x100xbf16, #tpu.memory_space<vmem>>, vector<8x4xbf16>
    %cst_58 = arith.constant dense<0.000000e+00> : vector<8x80xf32>
    %50 = tpu.matmul %49, %48, %cst_58 {dimension_numbers = #tpu.dot_dimension_numbers<[1], [0], [0], [1], [0, 0, 1, 1], [], []>} : vector<8x4xbf16>, vector<4x80xbf16>, vector<8x80xf32> -> vector<8x80xf32>
    %51 = arith.addf %46, %50 : vector<8x80xf32>
    %c0_59 = arith.constant 0 : index
    %c0_60 = arith.constant 0 : index
    %c0_61 = arith.constant 0 : index
    %c10 = arith.constant 10 : index
    %52 = vector.load %arg2[%c0_59, %c0_60, %c0_61, %c10] : memref<1x4x4x110xbf16, #tpu.memory_space<vmem>>, vector<1x1x4x80xbf16>
    %53 = vector.shape_cast %52 : vector<1x1x4x80xbf16> to vector<4x80xbf16>
    %c0_62 = arith.constant 0 : index
    %c40 = arith.constant 40 : index
    %54 = vector.load %arg3[%c0_62, %c40] : memref<8x100xbf16, #tpu.memory_space<vmem>>, vector<8x4xbf16>
    %cst_63 = arith.constant dense<0.000000e+00> : vector<8x80xf32>
    %55 = tpu.matmul %54, %53, %cst_63 {dimension_numbers = #tpu.dot_dimension_numbers<[1], [0], [0], [1], [0, 0, 1, 1], [], []>} : vector<8x4xbf16>, vector<4x80xbf16>, vector<8x80xf32> -> vector<8x80xf32>
    %56 = arith.addf %51, %55 : vector<8x80xf32>
    %c0_64 = arith.constant 0 : index
    %c1_65 = arith.constant 1 : index
    %c0_66 = arith.constant 0 : index
    %c10_67 = arith.constant 10 : index
    %57 = vector.load %arg2[%c0_64, %c1_65, %c0_66, %c10_67] : memref<1x4x4x110xbf16, #tpu.memory_space<vmem>>, vector<1x1x4x80xbf16>
    %58 = vector.shape_cast %57 : vector<1x1x4x80xbf16> to vector<4x80xbf16>
    %c0_68 = arith.constant 0 : index
    %c44 = arith.constant 44 : index
    %59 = vector.load %arg3[%c0_68, %c44] : memref<8x100xbf16, #tpu.memory_space<vmem>>, vector<8x4xbf16>
    %cst_69 = arith.constant dense<0.000000e+00> : vector<8x80xf32>
    %60 = tpu.matmul %59, %58, %cst_69 {dimension_numbers = #tpu.dot_dimension_numbers<[1], [0], [0], [1], [0, 0, 1, 1], [], []>} : vector<8x4xbf16>, vector<4x80xbf16>, vector<8x80xf32> -> vector<8x80xf32>
    %61 = arith.addf %56, %60 : vector<8x80xf32>
    %c0_70 = arith.constant 0 : index
    %c0_71 = arith.constant 0 : index
    %c0_72 = arith.constant 0 : index
    %c11 = arith.constant 11 : index
    %62 = vector.load %arg2[%c0_70, %c0_71, %c0_72, %c11] : memref<1x4x4x110xbf16, #tpu.memory_space<vmem>>, vector<1x1x4x80xbf16>
    %63 = vector.shape_cast %62 : vector<1x1x4x80xbf16> to vector<4x80xbf16>
    %c0_73 = arith.constant 0 : index
    %c48 = arith.constant 48 : index
    %64 = vector.load %arg3[%c0_73, %c48] : memref<8x100xbf16, #tpu.memory_space<vmem>>, vector<8x4xbf16>
    %cst_74 = arith.constant dense<0.000000e+00> : vector<8x80xf32>
    %65 = tpu.matmul %64, %63, %cst_74 {dimension_numbers = #tpu.dot_dimension_numbers<[1], [0], [0], [1], [0, 0, 1, 1], [], []>} : vector<8x4xbf16>, vector<4x80xbf16>, vector<8x80xf32> -> vector<8x80xf32>
    %66 = arith.addf %61, %65 : vector<8x80xf32>
    %c0_75 = arith.constant 0 : index
    %c1_76 = arith.constant 1 : index
    %c0_77 = arith.constant 0 : index
    %c11_78 = arith.constant 11 : index
    %67 = vector.load %arg2[%c0_75, %c1_76, %c0_77, %c11_78] : memref<1x4x4x110xbf16, #tpu.memory_space<vmem>>, vector<1x1x4x80xbf16>
    %68 = vector.shape_cast %67 : vector<1x1x4x80xbf16> to vector<4x80xbf16>
    %c0_79 = arith.constant 0 : index
    %c52 = arith.constant 52 : index
    %69 = vector.load %arg3[%c0_79, %c52] : memref<8x100xbf16, #tpu.memory_space<vmem>>, vector<8x4xbf16>
    %cst_80 = arith.constant dense<0.000000e+00> : vector<8x80xf32>
    %70 = tpu.matmul %69, %68, %cst_80 {dimension_numbers = #tpu.dot_dimension_numbers<[1], [0], [0], [1], [0, 0, 1, 1], [], []>} : vector<8x4xbf16>, vector<4x80xbf16>, vector<8x80xf32> -> vector<8x80xf32>
    %71 = arith.addf %66, %70 : vector<8x80xf32>
    %c0_81 = arith.constant 0 : index
    %c0_82 = arith.constant 0 : index
    %c0_83 = arith.constant 0 : index
    %c12_84 = arith.constant 12 : index
    %72 = vector.load %arg2[%c0_81, %c0_82, %c0_83, %c12_84] : memref<1x4x4x110xbf16, #tpu.memory_space<vmem>>, vector<1x1x4x80xbf16>
    %73 = vector.shape_cast %72 : vector<1x1x4x80xbf16> to vector<4x80xbf16>
    %c0_85 = arith.constant 0 : index
    %c56 = arith.constant 56 : index
    %74 = vector.load %arg3[%c0_85, %c56] : memref<8x100xbf16, #tpu.memory_space<vmem>>, vector<8x4xbf16>
    %cst_86 = arith.constant dense<0.000000e+00> : vector<8x80xf32>
    %75 = tpu.matmul %74, %73, %cst_86 {dimension_numbers = #tpu.dot_dimension_numbers<[1], [0], [0], [1], [0, 0, 1, 1], [], []>} : vector<8x4xbf16>, vector<4x80xbf16>, vector<8x80xf32> -> vector<8x80xf32>
    %76 = arith.addf %71, %75 : vector<8x80xf32>
    %c0_87 = arith.constant 0 : index
    %c2_88 = arith.constant 2 : index
    %c0_89 = arith.constant 0 : index
    %c10_90 = arith.constant 10 : index
    %77 = vector.load %arg2[%c0_87, %c2_88, %c0_89, %c10_90] : memref<1x4x4x110xbf16, #tpu.memory_space<vmem>>, vector<1x1x4x80xbf16>
    %78 = vector.shape_cast %77 : vector<1x1x4x80xbf16> to vector<4x80xbf16>
    %c0_91 = arith.constant 0 : index
    %c60 = arith.constant 60 : index
    %79 = vector.load %arg3[%c0_91, %c60] : memref<8x100xbf16, #tpu.memory_space<vmem>>, vector<8x4xbf16>
    %cst_92 = arith.constant dense<0.000000e+00> : vector<8x80xf32>
    %80 = tpu.matmul %79, %78, %cst_92 {dimension_numbers = #tpu.dot_dimension_numbers<[1], [0], [0], [1], [0, 0, 1, 1], [], []>} : vector<8x4xbf16>, vector<4x80xbf16>, vector<8x80xf32> -> vector<8x80xf32>
    %81 = arith.addf %76, %80 : vector<8x80xf32>
    %c0_93 = arith.constant 0 : index
    %c3_94 = arith.constant 3 : index
    %c0_95 = arith.constant 0 : index
    %c10_96 = arith.constant 10 : index
    %82 = vector.load %arg2[%c0_93, %c3_94, %c0_95, %c10_96] : memref<1x4x4x110xbf16, #tpu.memory_space<vmem>>, vector<1x1x4x80xbf16>
    %83 = vector.shape_cast %82 : vector<1x1x4x80xbf16> to vector<4x80xbf16>
    %c0_97 = arith.constant 0 : index
    %c64 = arith.constant 64 : index
    %84 = vector.load %arg3[%c0_97, %c64] : memref<8x100xbf16, #tpu.memory_space<vmem>>, vector<8x4xbf16>
    %cst_98 = arith.constant dense<0.000000e+00> : vector<8x80xf32>
    %85 = tpu.matmul %84, %83, %cst_98 {dimension_numbers = #tpu.dot_dimension_numbers<[1], [0], [0], [1], [0, 0, 1, 1], [], []>} : vector<8x4xbf16>, vector<4x80xbf16>, vector<8x80xf32> -> vector<8x80xf32>
    %86 = arith.addf %81, %85 : vector<8x80xf32>
    %c0_99 = arith.constant 0 : index
    %c2_100 = arith.constant 2 : index
    %c0_101 = arith.constant 0 : index
    %c11_102 = arith.constant 11 : index
    %87 = vector.load %arg2[%c0_99, %c2_100, %c0_101, %c11_102] : memref<1x4x4x110xbf16, #tpu.memory_space<vmem>>, vector<1x1x4x80xbf16>
    %88 = vector.shape_cast %87 : vector<1x1x4x80xbf16> to vector<4x80xbf16>
    %c0_103 = arith.constant 0 : index
    %c68 = arith.constant 68 : index
    %89 = vector.load %arg3[%c0_103, %c68] : memref<8x100xbf16, #tpu.memory_space<vmem>>, vector<8x4xbf16>
    %cst_104 = arith.constant dense<0.000000e+00> : vector<8x80xf32>
    %90 = tpu.matmul %89, %88, %cst_104 {dimension_numbers = #tpu.dot_dimension_numbers<[1], [0], [0], [1], [0, 0, 1, 1], [], []>} : vector<8x4xbf16>, vector<4x80xbf16>, vector<8x80xf32> -> vector<8x80xf32>
    %91 = arith.addf %86, %90 : vector<8x80xf32>
    %c0_105 = arith.constant 0 : index
    %c3_106 = arith.constant 3 : index
    %c0_107 = arith.constant 0 : index
    %c11_108 = arith.constant 11 : index
    %92 = vector.load %arg2[%c0_105, %c3_106, %c0_107, %c11_108] : memref<1x4x4x110xbf16, #tpu.memory_space<vmem>>, vector<1x1x4x80xbf16>
    %93 = vector.shape_cast %92 : vector<1x1x4x80xbf16> to vector<4x80xbf16>
    %c0_109 = arith.constant 0 : index
    %c72 = arith.constant 72 : index
    %94 = vector.load %arg3[%c0_109, %c72] : memref<8x100xbf16, #tpu.memory_space<vmem>>, vector<8x4xbf16>
    %cst_110 = arith.constant dense<0.000000e+00> : vector<8x80xf32>
    %95 = tpu.matmul %94, %93, %cst_110 {dimension_numbers = #tpu.dot_dimension_numbers<[1], [0], [0], [1], [0, 0, 1, 1], [], []>} : vector<8x4xbf16>, vector<4x80xbf16>, vector<8x80xf32> -> vector<8x80xf32>
    %96 = arith.addf %91, %95 : vector<8x80xf32>
    %c0_111 = arith.constant 0 : index
    %c2_112 = arith.constant 2 : index
    %c0_113 = arith.constant 0 : index
    %c12_114 = arith.constant 12 : index
    %97 = vector.load %arg2[%c0_111, %c2_112, %c0_113, %c12_114] : memref<1x4x4x110xbf16, #tpu.memory_space<vmem>>, vector<1x1x4x80xbf16>
    %98 = vector.shape_cast %97 : vector<1x1x4x80xbf16> to vector<4x80xbf16>
    %c0_115 = arith.constant 0 : index
    %c76 = arith.constant 76 : index
    %99 = vector.load %arg3[%c0_115, %c76] : memref<8x100xbf16, #tpu.memory_space<vmem>>, vector<8x4xbf16>
    %cst_116 = arith.constant dense<0.000000e+00> : vector<8x80xf32>
    %100 = tpu.matmul %99, %98, %cst_116 {dimension_numbers = #tpu.dot_dimension_numbers<[1], [0], [0], [1], [0, 0, 1, 1], [], []>} : vector<8x4xbf16>, vector<4x80xbf16>, vector<8x80xf32> -> vector<8x80xf32>
    %101 = arith.addf %96, %100 : vector<8x80xf32>
    %c0_117 = arith.constant 0 : index
    %c0_118 = arith.constant 0 : index
    %c0_119 = arith.constant 0 : index
    %c20_120 = arith.constant 20 : index
    %102 = vector.load %arg2[%c0_117, %c0_118, %c0_119, %c20_120] : memref<1x4x4x110xbf16, #tpu.memory_space<vmem>>, vector<1x1x4x80xbf16>
    %103 = vector.shape_cast %102 : vector<1x1x4x80xbf16> to vector<4x80xbf16>
    %c0_121 = arith.constant 0 : index
    %c80 = arith.constant 80 : index
    %104 = vector.load %arg3[%c0_121, %c80] : memref<8x100xbf16, #tpu.memory_space<vmem>>, vector<8x4xbf16>
    %cst_122 = arith.constant dense<0.000000e+00> : vector<8x80xf32>
    %105 = tpu.matmul %104, %103, %cst_122 {dimension_numbers = #tpu.dot_dimension_numbers<[1], [0], [0], [1], [0, 0, 1, 1], [], []>} : vector<8x4xbf16>, vector<4x80xbf16>, vector<8x80xf32> -> vector<8x80xf32>
    %106 = arith.addf %101, %105 : vector<8x80xf32>
    %c0_123 = arith.constant 0 : index
    %c1_124 = arith.constant 1 : index
    %c0_125 = arith.constant 0 : index
    %c20_126 = arith.constant 20 : index
    %107 = vector.load %arg2[%c0_123, %c1_124, %c0_125, %c20_126] : memref<1x4x4x110xbf16, #tpu.memory_space<vmem>>, vector<1x1x4x80xbf16>
    %108 = vector.shape_cast %107 : vector<1x1x4x80xbf16> to vector<4x80xbf16>
    %c0_127 = arith.constant 0 : index
    %c84 = arith.constant 84 : index
    %109 = vector.load %arg3[%c0_127, %c84] : memref<8x100xbf16, #tpu.memory_space<vmem>>, vector<8x4xbf16>
    %cst_128 = arith.constant dense<0.000000e+00> : vector<8x80xf32>
    %110 = tpu.matmul %109, %108, %cst_128 {dimension_numbers = #tpu.dot_dimension_numbers<[1], [0], [0], [1], [0, 0, 1, 1], [], []>} : vector<8x4xbf16>, vector<4x80xbf16>, vector<8x80xf32> -> vector<8x80xf32>
    %111 = arith.addf %106, %110 : vector<8x80xf32>
    %c0_129 = arith.constant 0 : index
    %c0_130 = arith.constant 0 : index
    %c0_131 = arith.constant 0 : index
    %c21 = arith.constant 21 : index
    %112 = vector.load %arg2[%c0_129, %c0_130, %c0_131, %c21] : memref<1x4x4x110xbf16, #tpu.memory_space<vmem>>, vector<1x1x4x80xbf16>
    %113 = vector.shape_cast %112 : vector<1x1x4x80xbf16> to vector<4x80xbf16>
    %c0_132 = arith.constant 0 : index
    %c88 = arith.constant 88 : index
    %114 = vector.load %arg3[%c0_132, %c88] : memref<8x100xbf16, #tpu.memory_space<vmem>>, vector<8x4xbf16>
    %cst_133 = arith.constant dense<0.000000e+00> : vector<8x80xf32>
    %115 = tpu.matmul %114, %113, %cst_133 {dimension_numbers = #tpu.dot_dimension_numbers<[1], [0], [0], [1], [0, 0, 1, 1], [], []>} : vector<8x4xbf16>, vector<4x80xbf16>, vector<8x80xf32> -> vector<8x80xf32>
    %116 = arith.addf %111, %115 : vector<8x80xf32>
    %c0_134 = arith.constant 0 : index
    %c1_135 = arith.constant 1 : index
    %c0_136 = arith.constant 0 : index
    %c21_137 = arith.constant 21 : index
    %117 = vector.load %arg2[%c0_134, %c1_135, %c0_136, %c21_137] : memref<1x4x4x110xbf16, #tpu.memory_space<vmem>>, vector<1x1x4x80xbf16>
    %118 = vector.shape_cast %117 : vector<1x1x4x80xbf16> to vector<4x80xbf16>
    %c0_138 = arith.constant 0 : index
    %c92 = arith.constant 92 : index
    %119 = vector.load %arg3[%c0_138, %c92] : memref<8x100xbf16, #tpu.memory_space<vmem>>, vector<8x4xbf16>
    %cst_139 = arith.constant dense<0.000000e+00> : vector<8x80xf32>
    %120 = tpu.matmul %119, %118, %cst_139 {dimension_numbers = #tpu.dot_dimension_numbers<[1], [0], [0], [1], [0, 0, 1, 1], [], []>} : vector<8x4xbf16>, vector<4x80xbf16>, vector<8x80xf32> -> vector<8x80xf32>
    %121 = arith.addf %116, %120 : vector<8x80xf32>
    %c0_140 = arith.constant 0 : index
    %c0_141 = arith.constant 0 : index
    %c0_142 = arith.constant 0 : index
    %c22 = arith.constant 22 : index
    %122 = vector.load %arg2[%c0_140, %c0_141, %c0_142, %c22] : memref<1x4x4x110xbf16, #tpu.memory_space<vmem>>, vector<1x1x4x80xbf16>
    %123 = vector.shape_cast %122 : vector<1x1x4x80xbf16> to vector<4x80xbf16>
    %c0_143 = arith.constant 0 : index
    %c96 = arith.constant 96 : index
    %124 = vector.load %arg3[%c0_143, %c96] : memref<8x100xbf16, #tpu.memory_space<vmem>>, vector<8x4xbf16>
    %cst_144 = arith.constant dense<0.000000e+00> : vector<8x80xf32>
    %125 = tpu.matmul %124, %123, %cst_144 {dimension_numbers = #tpu.dot_dimension_numbers<[1], [0], [0], [1], [0, 0, 1, 1], [], []>} : vector<8x4xbf16>, vector<4x80xbf16>, vector<8x80xf32> -> vector<8x80xf32>
    %126 = arith.addf %121, %125 : vector<8x80xf32>
    %127 = vector.broadcast %0 : vector<8x1xf32> to vector<8x80xf32>
    %128 = arith.addf %126, %127 : vector<8x80xf32>
    %cst_145 = arith.constant 0.000000e+00 : f32
    %129 = vector.broadcast %cst_145 : f32 to vector<8x80xf32>
    %130 = arith.maximumf %128, %129 : vector<8x80xf32>
    %c0_146 = arith.constant 0 : index
    %c0_147 = arith.constant 0 : index
    %c0_148 = arith.constant 0 : index
    %131 = vector.load %arg5[%c0_146, %c0_147, %c0_148] : memref<1x8x80xf32, #tpu.memory_space<vmem>>, vector<1x8x80xf32>
    %132 = vector.shape_cast %131 : vector<1x8x80xf32> to vector<8x80xf32>
    %133 = vector.shape_cast %130 : vector<8x80xf32> to vector<1x8x80xf32>
    tpu.vector_store %arg5[%c0_146, %c0_147, %c0_148], %133 {strides = array<i32>} : memref<1x8x80xf32, #tpu.memory_space<vmem>>, vector<1x8x80xf32>,
    return
  }
  func.func @transform_0(%arg0: i32, %arg1: i32) -> (i32, i32, i32, i32) {
    %c0_i32 = arith.constant 0 : i32
    %c0_i32_0 = arith.constant 0 : i32
    %c0_i32_1 = arith.constant 0 : i32
    %c0_i32_2 = arith.constant 0 : i32
    return %arg0, %c0_i32, %c0_i32_0, %c0_i32_1 : i32, i32, i32, i32
  }
  func.func @transform_1(%arg0: i32, %arg1: i32) -> (i32, i32) {
    %c0_i32 = arith.constant 0 : i32
    %c0_i32_0 = arith.constant 0 : i32
    %c0_i32_1 = arith.constant 0 : i32
    return %c0_i32, %c0_i32_0 : i32, i32
  }
  func.func @transform_2(%arg0: i32, %arg1: i32) -> (i32, i32) {
    %c0_i32 = arith.constant 0 : i32
    %c0_i32_0 = arith.constant 0 : i32
    %c0_i32_1 = arith.constant 0 : i32
    return %c0_i32, %c0_i32_0 : i32, i32
  }
  func.func @transform_3(%arg0: i32, %arg1: i32) -> (i32, i32, i32) {
    %c0_i32 = arith.constant 0 : i32
    %c0_i32_0 = arith.constant 0 : i32
    %c0_i32_1 = arith.constant 0 : i32
    return %arg0, %c0_i32, %c0_i32_0 : i32, i32, i32
  }
}

</mosaic_0001>

<llo_original>
// kernel: down_conv_layer.1
$region0: #{down_conv_layer.1}
  #allocation0 [shape = 'u32[]', space=smem, size = 0x4, offset = 0x4, fixed_abs, tag = 'smem constant byte address 0x4 - core index']
  #allocation1 [shape = 'u32[144,128]{1,0:T(1,128)}', space=vmem, size = 0x12000, scoped, tag = 'internal scratch']
  %s0 = inlined_call_operand.vmem [shape: bf16[2,4,4,110], index: 0, kind: input, shape index: {}]
  %s1 = inlined_call_operand.vmem [shape: bf16[8,100], index: 1, kind: input, shape index: {}]
  %s2 = inlined_call_operand.vmem [shape: f32[8,1], index: 2, kind: input, shape index: {}]
  %s3 = inlined_call_operand.vmem [shape: f32[2,8,80], index: 3, kind: output, shape index: {}]
  %s4 = sld [smem:[#allocation0]]
  $region45: #{down_conv_layer.1} parent=0
    _
  %s6 = ssub.s32 1, %s4
  %s7 = scalar_select 0, %s6, %s4
  loop: start=0, step=1, limit=4
  $region2: #{down_conv_layer.1} parent=0 // loop_pre_header
    _
  $region3: #{down_conv_layer.1} parent=0 // loop_header
    %s9 = sphi 0, %s13
    %p10 = scmp.ge.s32.totalorder %s9, 4
    %s16 = sphi 0, %s28
    %s17 = sphi 0, %s24
    %s18 = sphi 0, %s16
    %s19 = sphi 0, %s17
    %s20 = sphi 0, %s18
    %s21 = sphi 0, %s19
    %s31 = sphi 0, %s33
    %s34 = sphi 0, %s31
    %s35 = sphi 0, %s34
    %s51 = sphi 0, %s35
    %s55 = sphi 0, %s55
    %s57 = sphi 0, %s55
    %s58 = sphi 0, %s57
    %s72 = sphi 0, %s58
    %s76 = sphi 0, %s76
    %s78 = sphi 0, %s76
    %s79 = sphi 0, %s78
    %s93 = sphi 0, %s79
    %s99 = sphi 0, %s101
    %s102 = sphi 0, %s99
    %s103 = sphi 0, %s102
    %s119 = sphi 0, %s103
  $region4: #{down_conv_layer.1} parent=0 // loop_header_branch
    %12 = sbr.rel (%p10) target = $region8
  $region5: #{down_conv_layer.1} parent=0 // loop_body
    %s14 = ssub.s32 %s9, 1
    %s15 = ssub.s32 %s9, 2
    %s22 = sadd.s32 1, %s17
    %p23 = scmp.ge.s32.totalorder %s22, 1
    %s24 = scalar_select %p23, 0, %s22
    %s25 = sadd.s32 1, %s16
    %s26 = scalar_select %p23, %s25, %s16
    %p27 = scmp.ge.s32.totalorder %s26, 2
    %s28 = scalar_select %p27, 0, %s26
    %s29 = ssub.s32 %s16, %s28
    %p30 = scmp.eq.s32.totalorder %s29, 0
    %s32 = sadd.s32 %s31, 1
    %s33 = scalar_select %p30, %s31, %s32
    %p36 = pneg %p30
    %p37 = scmp.eq.s32.totalorder %s9, 1
    %p38 = por %p36, %p37
    %p39 = scmp.ne.s32.totalorder %s31, %s34
    %p40 = scmp.eq.s32.totalorder %s9, 0
    %p41 = por %p39, %p40
    %p42 = scmp.ne.s32.totalorder %s31, %s34
    %p43 = scmp.eq.s32.totalorder %s14, 1
    %p44 = por %p42, %p43
    %p45 = scmp.ne.s32.totalorder %s34, %s35
    %p46 = scmp.eq.s32.totalorder %s14, 0
    %p47 = por %p45, %p46
    %p48 = scmp.ne.s32.totalorder %s34, %s35
    %p49 = scmp.eq.s32.totalorder %s15, 1
    %p50 = por %p48, %p49
    %p52 = scmp.ne.s32.totalorder %s35, %s51
    %p53 = scmp.eq.s32.totalorder %s15, 0
    %p54 = por %p52, %p53
    %s56 = sadd.s32 %s55, 1
    %p59 = scmp.eq.s32.totalorder %s9, 1
    %p60 = scmp.ne.s32.totalorder %s55, %s57
    %p61 = scmp.eq.s32.totalorder %s9, 0
    %p62 = por %p60, %p61
    %p63 = scmp.ne.s32.totalorder %s55, %s57
    %p64 = scmp.eq.s32.totalorder %s14, 1
    %p65 = por %p63, %p64
    %p66 = scmp.ne.s32.totalorder %s57, %s58
    %p67 = scmp.eq.s32.totalorder %s14, 0
    %p68 = por %p66, %p67
    %p69 = scmp.ne.s32.totalorder %s57, %s58
    %p70 = scmp.eq.s32.totalorder %s15, 1
    %p71 = por %p69, %p70
    %p73 = scmp.ne.s32.totalorder %s58, %s72
    %p74 = scmp.eq.s32.totalorder %s15, 0
    %p75 = por %p73, %p74
    %s77 = sadd.s32 %s76, 1
    %p80 = scmp.eq.s32.totalorder %s9, 1
    %p81 = scmp.ne.s32.totalorder %s76, %s78
    %p82 = scmp.eq.s32.totalorder %s9, 0
    %p83 = por %p81, %p82
    %p84 = scmp.ne.s32.totalorder %s76, %s78
    %p85 = scmp.eq.s32.totalorder %s14, 1
    %p86 = por %p84, %p85
    %p87 = scmp.ne.s32.totalorder %s78, %s79
    %p88 = scmp.eq.s32.totalorder %s14, 0
    %p89 = por %p87, %p88
    %p90 = scmp.ne.s32.totalorder %s78, %s79
    %p91 = scmp.eq.s32.totalorder %s15, 1
    %p92 = por %p90, %p91
    %p94 = scmp.ne.s32.totalorder %s79, %s93
    %p95 = scmp.eq.s32.totalorder %s15, 0
    %p96 = por %p94, %p95
    %s97 = ssub.s32 %s16, %s28
    %p98 = scmp.eq.s32.totalorder %s97, 0
    %s100 = sadd.s32 %s99, 1
    %s101 = scalar_select %p98, %s99, %s100
    %p104 = pneg %p98
    %p105 = scmp.eq.s32.totalorder %s9, 1
    %p106 = por %p104, %p105
    %p107 = scmp.ne.s32.totalorder %s99, %s102
    %p108 = scmp.eq.s32.totalorder %s9, 0
    %p109 = por %p107, %p108
    %p110 = scmp.ne.s32.totalorder %s99, %s102
    %p111 = scmp.eq.s32.totalorder %s14, 1
    %p112 = por %p110, %p111
    %p113 = scmp.ne.s32.totalorder %s102, %s103
    %p114 = scmp.eq.s32.totalorder %s14, 0
    %p115 = por %p113, %p114
    %p116 = scmp.ne.s32.totalorder %s102, %s103
    %p117 = scmp.eq.s32.totalorder %s15, 1
    %p118 = por %p116, %p117
    %p120 = scmp.ne.s32.totalorder %s103, %s119
    %p121 = scmp.eq.s32.totalorder %s15, 0
    %p122 = por %p120, %p121
    %p123 = scmp.le.s32.totalorder 1, %s9
    %p124 = scmp.lt.s32.totalorder %s9, 3
    %p125 = pnand %p123, %p124
    %p126 = pneg %p125
    // Predicated region
    $region9: #{down_conv_layer.1} parent=5 // pred_check
      _
    $region10: #{down_conv_layer.1} parent=5 // pred_check_branch
      %128 = sbr.rel (%p125) target = $region12
    $region11: #{down_conv_layer.1} parent=5 // pred_region
      %s129 = ssub.s32 %s9, 1
      // Predicated region
      $region13: #{down_conv_layer.1} parent=11 // pred_check
        %p130 = pneg %p68
      $region14: #{down_conv_layer.1} parent=11 // pred_check_branch
        %132 = sbr.rel (%p130) target = $region16
      $region15: #{down_conv_layer.1} parent=11 // pred_region
        _
      $region16: #{down_conv_layer.1} parent=11 // pred_fallthru
        _
      // Predicated region
      $region17: #{down_conv_layer.1} parent=11 // pred_check
        %p133 = pneg %p89
      $region18: #{down_conv_layer.1} parent=11 // pred_check_branch
        %135 = sbr.rel (%p133) target = $region20
      $region19: #{down_conv_layer.1} parent=11 // pred_region
        _
      $region20: #{down_conv_layer.1} parent=11 // pred_fallthru
        _
    $region12: #{down_conv_layer.1} parent=5 // pred_fallthru
      _
    %p136 = scmp.lt.s32.totalorder %s9, 2
    // Predicated region
    $region21: #{down_conv_layer.1} parent=5 // pred_check
      %p137 = pneg %p136
    $region22: #{down_conv_layer.1} parent=5 // pred_check_branch
      %139 = sbr.rel (%p137) target = $region24
    $region23: #{down_conv_layer.1} parent=5 // pred_region
      // Predicated region
      $region25: #{down_conv_layer.1} parent=23 // pred_check
        %p140 = pneg %p41
      $region26: #{down_conv_layer.1} parent=23 // pred_check_branch
        %142 = sbr.rel (%p140) target = $region28
      $region27: #{down_conv_layer.1} parent=23 // pred_region
        %p143 = scmp.lt.s32.totalorder %s16, 1
        %s144 = scalar_select %p143, %s16, 1
        %s145 = smul.addr %s144, 4
        %s146 = smul.addr %s145, 2
        %s147 = scalar_lea.vmem %s0, %s146
      $region28: #{down_conv_layer.1} parent=23 // pred_fallthru
        _
    $region24: #{down_conv_layer.1} parent=5 // pred_fallthru
      _
    %p148 = scmp.le.s32.totalorder 1, %s9
    %p149 = scmp.lt.s32.totalorder %s9, 3
    %p150 = pnand %p148, %p149
    %p151 = pneg %p150
    // Predicated region
    $region29: #{down_conv_layer.1} parent=5 // pred_check
      _
    $region30: #{down_conv_layer.1} parent=5 // pred_check_branch
      %153 = sbr.rel (%p150) target = $region32
    $region31: #{down_conv_layer.1} parent=5 // pred_region
      %s154 = ssub.s32 %s9, 1
      %p155 = scmp.lt.s32.totalorder %s18, 1
      %s156 = scalar_select %p155, %s18, 1
      %s157 = smul.addr %s156, 4
      %s158 = smul.addr %s157, 2
      %s159 = scalar_lea.vmem %s0, %s158
      %p160 = pneg %p47
      %p161 = pneg %p44
      %p162 = pneg %p68
      %p163 = pneg %p65
      %p164 = pneg %p89
      %p165 = pneg %p86
      %p166 = pneg %p115
      %p167 = pneg %p112
      %p168 = scmp.lt.s32.totalorder %s18, 1
      %s169 = scalar_select %p168, %s18, 1
      %s170 = smul.addr %s169, 8
      %s171 = scalar_lea.vmem %s3, %s170
      %p172 = scmp.lt.s32.totalorder %s18, 1
      %s173 = scalar_select %p172, %s18, 1
      %s174 = smul.addr %s173, 4
      %s175 = smul.addr %s174, 2
      %s176 = scalar_lea.vmem %s0, %s175
      %p177 = scmp.lt.s32.totalorder %s18, 1
      %s178 = scalar_select %p177, %s18, 1
      %s179 = smul.addr %s178, 8
      %s180 = scalar_lea.vmem %s3, %s179
      %v182 = vld [vmem:[%s2] sm:$0xff]
      %v183 = vld [vmem:[%s176] sm:$0x3]
      %v184 = vld [vmem:[%s1] sm:$0xf]
      %s185 = scalar_lea.vmem %s176, 2
      %v186 = vld [vmem:[%s185] sm:$0x3]
      %v188 = vunpack.c.l.b16 %v184
      %v189 = vpack.c.b16 %v188, %v188
      %190 = vrot.lane.b32.xlu0 %v189, 124
      %v191 = vpop.permute.xlu0 %190
      %vm192 = vcmask 31744
      %v194 = vsel %vm192, %v191, 0
      %vm196 = vcmask 1041408
      %v198 = vsel %vm196, %v186, 0
      %200 = vmatprep.subr.bf16.mxu0 0
      %201 = vmatpush1.bf16.msra.mxu0 %v198
      %202 = vmatprep.subr.bf16.mxu0 0
      %203 = vmatpush1.bf16.msra.mxu0 0
      %204 = vmatprep.subr.bf16.mxu0 0
      %205 = vmatpush1.bf16.msra.mxu0 0
      %206 = vmatprep.subr.bf16.mxu0 0
      %207 = vmatpush1.bf16.msra.mxu0 0
      %208 = vmatprep.subr.bf16.mxu0 0
      %209 = vmatpush1.bf16.msra.mxu0 0
      %210 = vmatprep.subr.bf16.mxu0 0
      %211 = vmatpush1.bf16.msra.mxu0 0
      %212 = vmatprep.subr.bf16.mxu0 0
      %213 = vmatpush1.bf16.msra.mxu0 0
      %214 = vmatprep.subr.bf16.mxu0 0
      %215 = vmatpush1.bf16.msra.mxu0 0
      %216 = vmatprep.subr.bf16.mxu0 0
      %217 = vmatpush1.bf16.msra.mxu0 0
      %218 = vmatprep.subr.bf16.mxu0 0
      %219 = vmatpush1.bf16.msra.mxu0 0
      %220 = vmatprep.subr.bf16.mxu0 0
      %221 = vmatpush1.bf16.msra.mxu0 0
      %222 = vmatprep.subr.bf16.mxu0 0
      %223 = vmatpush1.bf16.msra.mxu0 0
      %224 = vmatprep.subr.bf16.mxu0 0
      %225 = vmatpush1.bf16.msra.mxu0 0
      %226 = vmatprep.subr.bf16.mxu0 0
      %227 = vmatpush1.bf16.msra.mxu0 0
      %228 = vmatprep.subr.bf16.mxu0 0
      %229 = vmatpush1.bf16.msra.mxu0 0
      %230 = vmatprep.subr.bf16.mxu0 0
      %231 = vmatpush1.bf16.msra.mxu0 0
      %232 = vmatprep.mubr.bf16.mxu0 0
      %233 = vmatmul.mubr.bf16.gmra.mrb[0].mxu0 %v194
      %v234 = vpop.f32.mrb[0].mxu0
      %v235 = vadd.f32 0.0, %v234
      %v236 = vpop.f32.mrb[0].mxu0
      %v237 = vpop.f32.mrb[0].mxu0
      %v238 = vpop.f32.mrb[0].mxu0
      %239 = vdwg.mxu0
      %v241 = vsel %vm192, %v184, 0
      %v244 = vsel %vm196, %v183, 0
      %246 = vmatprep.subr.bf16.mxu0 0
      %247 = vmatpush1.bf16.msra.mxu0 %v244
      %248 = vmatprep.subr.bf16.mxu0 0
      %249 = vmatpush1.bf16.msra.mxu0 0
      %250 = vmatprep.subr.bf16.mxu0 0
      %251 = vmatpush1.bf16.msra.mxu0 0
      %252 = vmatprep.subr.bf16.mxu0 0
      %253 = vmatpush1.bf16.msra.mxu0 0
      %254 = vmatprep.subr.bf16.mxu0 0
      %255 = vmatpush1.bf16.msra.mxu0 0
      %256 = vmatprep.subr.bf16.mxu0 0
      %257 = vmatpush1.bf16.msra.mxu0 0
      %258 = vmatprep.subr.bf16.mxu0 0
      %259 = vmatpush1.bf16.msra.mxu0 0
      %260 = vmatprep.subr.bf16.mxu0 0
      %261 = vmatpush1.bf16.msra.mxu0 0
      %262 = vmatprep.subr.bf16.mxu0 0
      %263 = vmatpush1.bf16.msra.mxu0 0
      %264 = vmatprep.subr.bf16.mxu0 0
      %265 = vmatpush1.bf16.msra.mxu0 0
      %266 = vmatprep.subr.bf16.mxu0 0
      %267 = vmatpush1.bf16.msra.mxu0 0
      %268 = vmatprep.subr.bf16.mxu0 0
      %269 = vmatpush1.bf16.msra.mxu0 0
      %270 = vmatprep.subr.bf16.mxu0 0
      %271 = vmatpush1.bf16.msra.mxu0 0
      %272 = vmatprep.subr.bf16.mxu0 0
      %273 = vmatpush1.bf16.msra.mxu0 0
      %274 = vmatprep.subr.bf16.mxu0 0
      %275 = vmatpush1.bf16.msra.mxu0 0
      %276 = vmatprep.subr.bf16.mxu0 0
      %277 = vmatpush1.bf16.msra.mxu0 0
      %278 = vmatprep.mubr.bf16.mxu0 0
      %279 = vmatmul.mubr.bf16.gmra.mrb[0].mxu0 %v241
      %v280 = vpop.f32.mrb[0].mxu0
      %v281 = vadd.f32 %v235, %v280
      %v282 = vpop.f32.mrb[0].mxu0
      %v283 = vpop.f32.mrb[0].mxu0
      %v284 = vpop.f32.mrb[0].mxu0
      %285 = vdwg.mxu0
      %286 = vrot.lane.b32.xlu0 %v189, 120
      %v287 = vpop.permute.xlu0 %286
      %v290 = vunpack.c.l.s4 1983009808
      %v291 = vunpack.c.0.s8 %v290
      %v292 = vlaneseq
      %v293 = vshrl.u32 %v292, 7
      %v294 = vsub.s32 %v291, %v293
      %v295 = vrot.slane %v183, %v294
      %296 = vrot.lane.b32.xlu0 %v295, 127
      %v297 = vpop.permute.xlu0 %296
      %v299 = vsel %vm192, %v287, 0
      %v302 = vsel %vm196, %v297, 0
      %304 = vmatprep.subr.bf16.mxu0 0
      %305 = vmatpush1.bf16.msra.mxu0 %v302
      %306 = vmatprep.subr.bf16.mxu0 0
      %307 = vmatpush1.bf16.msra.mxu0 0
      %308 = vmatprep.subr.bf16.mxu0 0
      %309 = vmatpush1.bf16.msra.mxu0 0
      %310 = vmatprep.subr.bf16.mxu0 0
      %311 = vmatpush1.bf16.msra.mxu0 0
      %312 = vmatprep.subr.bf16.mxu0 0
      %313 = vmatpush1.bf16.msra.mxu0 0
      %314 = vmatprep.subr.bf16.mxu0 0
      %315 = vmatpush1.bf16.msra.mxu0 0
      %316 = vmatprep.subr.bf16.mxu0 0
      %317 = vmatpush1.bf16.msra.mxu0 0
      %318 = vmatprep.subr.bf16.mxu0 0
      %319 = vmatpush1.bf16.msra.mxu0 0
      %320 = vmatprep.subr.bf16.mxu0 0
      %321 = vmatpush1.bf16.msra.mxu0 0
      %322 = vmatprep.subr.bf16.mxu0 0
      %323 = vmatpush1.bf16.msra.mxu0 0
      %324 = vmatprep.subr.bf16.mxu0 0
      %325 = vmatpush1.bf16.msra.mxu0 0
      %326 = vmatprep.subr.bf16.mxu0 0
      %327 = vmatpush1.bf16.msra.mxu0 0
      %328 = vmatprep.subr.bf16.mxu0 0
      %329 = vmatpush1.bf16.msra.mxu0 0
      %330 = vmatprep.subr.bf16.mxu0 0
      %331 = vmatpush1.bf16.msra.mxu0 0
      %332 = vmatprep.subr.bf16.mxu0 0
      %333 = vmatpush1.bf16.msra.mxu0 0
      %334 = vmatprep.subr.bf16.mxu0 0
      %335 = vmatpush1.bf16.msra.mxu0 0
      %336 = vmatprep.mubr.bf16.mxu0 0
      %337 = vmatmul.mubr.bf16.gmra.mrb[0].mxu0 %v299
      %v338 = vpop.f32.mrb[0].mxu0
      %v339 = vadd.f32 0.0, %v338
      %v340 = vpop.f32.mrb[0].mxu0
      %v341 = vpop.f32.mrb[0].mxu0
      %v342 = vpop.f32.mrb[0].mxu0
      %343 = vdwg.mxu0
      %v344 = vadd.f32 %v281, %v339
      %v345 = vld [vmem:[%s185] sm:$0x3]
      %v346 = vld [vmem:[%s1] sm:$0xf]
      %v348 = vunpack.c.l.b16 %v346
      %v349 = vpack.c.b16 %v348, %v348
      %350 = vrot.lane.b32.xlu0 %v349, 116
      %v351 = vpop.permute.xlu0 %350
      %v354 = vunpack.c.l.s4 1983009808
      %v355 = vunpack.c.0.s8 %v354
      %v356 = vlaneseq
      %v357 = vshrl.u32 %v356, 7
      %v358 = vsub.s32 %v355, %v357
      %v359 = vrot.slane %v345, %v358
      %360 = vrot.lane.b32.xlu0 %v359, 127
      %v361 = vpop.permute.xlu0 %360
      %v363 = vsel %vm192, %v351, 0
      %v366 = vsel %vm196, %v361, 0
      %368 = vmatprep.subr.bf16.mxu0 0
      %369 = vmatpush1.bf16.msra.mxu0 %v366
      %370 = vmatprep.subr.bf16.mxu0 0
      %371 = vmatpush1.bf16.msra.mxu0 0
      %372 = vmatprep.subr.bf16.mxu0 0
      %373 = vmatpush1.bf16.msra.mxu0 0
      %374 = vmatprep.subr.bf16.mxu0 0
      %375 = vmatpush1.bf16.msra.mxu0 0
      %376 = vmatprep.subr.bf16.mxu0 0
      %377 = vmatpush1.bf16.msra.mxu0 0
      %378 = vmatprep.subr.bf16.mxu0 0
      %379 = vmatpush1.bf16.msra.mxu0 0
      %380 = vmatprep.subr.bf16.mxu0 0
      %381 = vmatpush1.bf16.msra.mxu0 0
      %382 = vmatprep.subr.bf16.mxu0 0
      %383 = vmatpush1.bf16.msra.mxu0 0
      %384 = vmatprep.subr.bf16.mxu0 0
      %385 = vmatpush1.bf16.msra.mxu0 0
      %386 = vmatprep.subr.bf16.mxu0 0
      %387 = vmatpush1.bf16.msra.mxu0 0
      %388 = vmatprep.subr.bf16.mxu0 0
      %389 = vmatpush1.bf16.msra.mxu0 0
      %390 = vmatprep.subr.bf16.mxu0 0
      %391 = vmatpush1.bf16.msra.mxu0 0
      %392 = vmatprep.subr.bf16.mxu0 0
      %393 = vmatpush1.bf16.msra.mxu0 0
      %394 = vmatprep.subr.bf16.mxu0 0
      %395 = vmatpush1.bf16.msra.mxu0 0
      %396 = vmatprep.subr.bf16.mxu0 0
      %397 = vmatpush1.bf16.msra.mxu0 0
      %398 = vmatprep.subr.bf16.mxu0 0
      %399 = vmatpush1.bf16.msra.mxu0 0
      %400 = vmatprep.mubr.bf16.mxu0 0
      %401 = vmatmul.mubr.bf16.gmra.mrb[0].mxu0 %v363
      %v402 = vpop.f32.mrb[0].mxu0
      %v403 = vadd.f32 0.0, %v402
      %v404 = vpop.f32.mrb[0].mxu0
      %v405 = vpop.f32.mrb[0].mxu0
      %v406 = vpop.f32.mrb[0].mxu0
      %407 = vdwg.mxu0
      %v408 = vadd.f32 %v344, %v403
      %v409 = vld [vmem:[%s176] sm:$0x3]
      %v410 = vld [vmem:[%s1] sm:$0xf]
      %v412 = vunpack.c.l.b16 %v410
      %v413 = vpack.c.b16 %v412, %v412
      %414 = vrot.lane.b32.xlu0 %v413, 112
      %v415 = vpop.permute.xlu0 %414
      %v418 = vunpack.c.l.s4 1983009808
      %v419 = vunpack.c.0.s8 %v418
      %v420 = vlaneseq
      %v421 = vshrl.u32 %v420, 7
      %v422 = vsub.s32 %v419, %v421
      %v423 = vrot.slane %v409, %v422
      %424 = vrot.lane.b32.xlu0 %v423, 126
      %v425 = vpop.permute.xlu0 %424
      %v427 = vsel %vm192, %v415, 0
      %v430 = vsel %vm196, %v425, 0
      %432 = vmatprep.subr.bf16.mxu0 0
      %433 = vmatpush1.bf16.msra.mxu0 %v430
      %434 = vmatprep.subr.bf16.mxu0 0
      %435 = vmatpush1.bf16.msra.mxu0 0
      %436 = vmatprep.subr.bf16.mxu0 0
      %437 = vmatpush1.bf16.msra.mxu0 0
      %438 = vmatprep.subr.bf16.mxu0 0
      %439 = vmatpush1.bf16.msra.mxu0 0
      %440 = vmatprep.subr.bf16.mxu0 0
      %441 = vmatpush1.bf16.msra.mxu0 0
      %442 = vmatprep.subr.bf16.mxu0 0
      %443 = vmatpush1.bf16.msra.mxu0 0
      %444 = vmatprep.subr.bf16.mxu0 0
      %445 = vmatpush1.bf16.msra.mxu0 0
      %446 = vmatprep.subr.bf16.mxu0 0
      %447 = vmatpush1.bf16.msra.mxu0 0
      %448 = vmatprep.subr.bf16.mxu0 0
      %449 = vmatpush1.bf16.msra.mxu0 0
      %450 = vmatprep.subr.bf16.mxu0 0
      %451 = vmatpush1.bf16.msra.mxu0 0
      %452 = vmatprep.subr.bf16.mxu0 0
      %453 = vmatpush1.bf16.msra.mxu0 0
      %454 = vmatprep.subr.bf16.mxu0 0
      %455 = vmatpush1.bf16.msra.mxu0 0
      %456 = vmatprep.subr.bf16.mxu0 0
      %457 = vmatpush1.bf16.msra.mxu0 0
      %458 = vmatprep.subr.bf16.mxu0 0
      %459 = vmatpush1.bf16.msra.mxu0 0
      %460 = vmatprep.subr.bf16.mxu0 0
      %461 = vmatpush1.bf16.msra.mxu0 0
      %462 = vmatprep.subr.bf16.mxu0 0
      %463 = vmatpush1.bf16.msra.mxu0 0
      %464 = vmatprep.mubr.bf16.mxu0 0
      %465 = vmatmul.mubr.bf16.gmra.mrb[0].mxu0 %v427
      %v466 = vpop.f32.mrb[0].mxu0
      %v467 = vadd.f32 0.0, %v466
      %v468 = vpop.f32.mrb[0].mxu0
      %v469 = vpop.f32.mrb[0].mxu0
      %v470 = vpop.f32.mrb[0].mxu0
      %471 = vdwg.mxu0
      %v472 = vadd.f32 %v408, %v467
      %s473 = scalar_lea.vmem %s176, 4
      %v474 = vld [vmem:[%s473] sm:$0x3]
      %v475 = vld [vmem:[%s1] sm:$0xf]
      %v477 = vunpack.c.l.b16 %v475
      %v478 = vpack.c.b16 %v477, %v477
      %479 = vrot.lane.b32.xlu0 %v478, 108
      %v480 = vpop.permute.xlu0 %479
      %v482 = vsel %vm192, %v480, 0
      %v485 = vsel %vm196, %v474, 0
      %487 = vmatprep.subr.bf16.mxu0 0
      %488 = vmatpush1.bf16.msra.mxu0 %v485
      %489 = vmatprep.subr.bf16.mxu0 0
      %490 = vmatpush1.bf16.msra.mxu0 0
      %491 = vmatprep.subr.bf16.mxu0 0
      %492 = vmatpush1.bf16.msra.mxu0 0
      %493 = vmatprep.subr.bf16.mxu0 0
      %494 = vmatpush1.bf16.msra.mxu0 0
      %495 = vmatprep.subr.bf16.mxu0 0
      %496 = vmatpush1.bf16.msra.mxu0 0
      %497 = vmatprep.subr.bf16.mxu0 0
      %498 = vmatpush1.bf16.msra.mxu0 0
      %499 = vmatprep.subr.bf16.mxu0 0
      %500 = vmatpush1.bf16.msra.mxu0 0
      %501 = vmatprep.subr.bf16.mxu0 0
      %502 = vmatpush1.bf16.msra.mxu0 0
      %503 = vmatprep.subr.bf16.mxu0 0
      %504 = vmatpush1.bf16.msra.mxu0 0
      %505 = vmatprep.subr.bf16.mxu0 0
      %506 = vmatpush1.bf16.msra.mxu0 0
      %507 = vmatprep.subr.bf16.mxu0 0
      %508 = vmatpush1.bf16.msra.mxu0 0
      %509 = vmatprep.subr.bf16.mxu0 0
      %510 = vmatpush1.bf16.msra.mxu0 0
      %511 = vmatprep.subr.bf16.mxu0 0
      %512 = vmatpush1.bf16.msra.mxu0 0
      %513 = vmatprep.subr.bf16.mxu0 0
      %514 = vmatpush1.bf16.msra.mxu0 0
      %515 = vmatprep.subr.bf16.mxu0 0
      %516 = vmatpush1.bf16.msra.mxu0 0
      %517 = vmatprep.subr.bf16.mxu0 0
      %518 = vmatpush1.bf16.msra.mxu0 0
      %519 = vmatprep.mubr.bf16.mxu0 0
      %520 = vmatmul.mubr.bf16.gmra.mrb[0].mxu0 %v482
      %v521 = vpop.f32.mrb[0].mxu0
      %v522 = vadd.f32 0.0, %v521
      %v523 = vpop.f32.mrb[0].mxu0
      %v524 = vpop.f32.mrb[0].mxu0
      %v525 = vpop.f32.mrb[0].mxu0
      %526 = vdwg.mxu0
      %v527 = vadd.f32 %v472, %v522
      %s528 = scalar_lea.vmem %s176, 6
      %v529 = vld [vmem:[%s528] sm:$0x3]
      %530 = vrot.lane.b32.xlu0 %v478, 104
      %v531 = vpop.permute.xlu0 %530
      %v533 = vsel %vm192, %v531, 0
      %v536 = vsel %vm196, %v529, 0
      %538 = vmatprep.subr.bf16.mxu0 0
      %539 = vmatpush1.bf16.msra.mxu0 %v536
      %540 = vmatprep.subr.bf16.mxu0 0
      %541 = vmatpush1.bf16.msra.mxu0 0
      %542 = vmatprep.subr.bf16.mxu0 0
      %543 = vmatpush1.bf16.msra.mxu0 0
      %544 = vmatprep.subr.bf16.mxu0 0
      %545 = vmatpush1.bf16.msra.mxu0 0
      %546 = vmatprep.subr.bf16.mxu0 0
      %547 = vmatpush1.bf16.msra.mxu0 0
      %548 = vmatprep.subr.bf16.mxu0 0
      %549 = vmatpush1.bf16.msra.mxu0 0
      %550 = vmatprep.subr.bf16.mxu0 0
      %551 = vmatpush1.bf16.msra.mxu0 0
      %552 = vmatprep.subr.bf16.mxu0 0
      %553 = vmatpush1.bf16.msra.mxu0 0
      %554 = vmatprep.subr.bf16.mxu0 0
      %555 = vmatpush1.bf16.msra.mxu0 0
      %556 = vmatprep.subr.bf16.mxu0 0
      %557 = vmatpush1.bf16.msra.mxu0 0
      %558 = vmatprep.subr.bf16.mxu0 0
      %559 = vmatpush1.bf16.msra.mxu0 0
      %560 = vmatprep.subr.bf16.mxu0 0
      %561 = vmatpush1.bf16.msra.mxu0 0
      %562 = vmatprep.subr.bf16.mxu0 0
      %563 = vmatpush1.bf16.msra.mxu0 0
      %564 = vmatprep.subr.bf16.mxu0 0
      %565 = vmatpush1.bf16.msra.mxu0 0
      %566 = vmatprep.subr.bf16.mxu0 0
      %567 = vmatpush1.bf16.msra.mxu0 0
      %568 = vmatprep.subr.bf16.mxu0 0
      %569 = vmatpush1.bf16.msra.mxu0 0
      %570 = vmatprep.mubr.bf16.mxu0 0
      %571 = vmatmul.mubr.bf16.gmra.mrb[0].mxu0 %v533
      %v572 = vpop.f32.mrb[0].mxu0
      %v573 = vadd.f32 0.0, %v572
      %v574 = vpop.f32.mrb[0].mxu0
      %v575 = vpop.f32.mrb[0].mxu0
      %v576 = vpop.f32.mrb[0].mxu0
      %577 = vdwg.mxu0
      %v578 = vadd.f32 %v527, %v573
      %579 = vrot.lane.b32.xlu0 %v478, 100
      %v580 = vpop.permute.xlu0 %579
      %v583 = vunpack.c.l.s4 1983009808
      %v584 = vunpack.c.0.s8 %v583
      %v585 = vlaneseq
      %v586 = vshrl.u32 %v585, 7
      %v587 = vsub.s32 %v584, %v586
      %v588 = vrot.slane %v474, %v587
      %589 = vrot.lane.b32.xlu0 %v588, 127
      %v590 = vpop.permute.xlu0 %589
      %v592 = vsel %vm192, %v580, 0
      %v595 = vsel %vm196, %v590, 0
      %597 = vmatprep.subr.bf16.mxu0 0
      %598 = vmatpush1.bf16.msra.mxu0 %v595
      %599 = vmatprep.subr.bf16.mxu0 0
      %600 = vmatpush1.bf16.msra.mxu0 0
      %601 = vmatprep.subr.bf16.mxu0 0
      %602 = vmatpush1.bf16.msra.mxu0 0
      %603 = vmatprep.subr.bf16.mxu0 0
      %604 = vmatpush1.bf16.msra.mxu0 0
      %605 = vmatprep.subr.bf16.mxu0 0
      %606 = vmatpush1.bf16.msra.mxu0 0
      %607 = vmatprep.subr.bf16.mxu0 0
      %608 = vmatpush1.bf16.msra.mxu0 0
      %609 = vmatprep.subr.bf16.mxu0 0
      %610 = vmatpush1.bf16.msra.mxu0 0
      %611 = vmatprep.subr.bf16.mxu0 0
      %612 = vmatpush1.bf16.msra.mxu0 0
      %613 = vmatprep.subr.bf16.mxu0 0
      %614 = vmatpush1.bf16.msra.mxu0 0
      %615 = vmatprep.subr.bf16.mxu0 0
      %616 = vmatpush1.bf16.msra.mxu0 0
      %617 = vmatprep.subr.bf16.mxu0 0
      %618 = vmatpush1.bf16.msra.mxu0 0
      %619 = vmatprep.subr.bf16.mxu0 0
      %620 = vmatpush1.bf16.msra.mxu0 0
      %621 = vmatprep.subr.bf16.mxu0 0
      %622 = vmatpush1.bf16.msra.mxu0 0
      %623 = vmatprep.subr.bf16.mxu0 0
      %624 = vmatpush1.bf16.msra.mxu0 0
      %625 = vmatprep.subr.bf16.mxu0 0
      %626 = vmatpush1.bf16.msra.mxu0 0
      %627 = vmatprep.subr.bf16.mxu0 0
      %628 = vmatpush1.bf16.msra.mxu0 0
      %629 = vmatprep.mubr.bf16.mxu0 0
      %630 = vmatmul.mubr.bf16.gmra.mrb[0].mxu0 %v592
      %v631 = vpop.f32.mrb[0].mxu0
      %v632 = vadd.f32 0.0, %v631
      %v633 = vpop.f32.mrb[0].mxu0
      %v634 = vpop.f32.mrb[0].mxu0
      %v635 = vpop.f32.mrb[0].mxu0
      %636 = vdwg.mxu0
      %v637 = vadd.f32 %v578, %v632
      %v638 = vld [vmem:[%s528] sm:$0x3]
      %v639 = vld [vmem:[%s1] sm:$0xf]
      %v641 = vunpack.c.l.b16 %v639
      %v642 = vpack.c.b16 %v641, %v641
      %643 = vrot.lane.b32.xlu0 %v642, 96
      %v644 = vpop.permute.xlu0 %643
      %v647 = vunpack.c.l.s4 1983009808
      %v648 = vunpack.c.0.s8 %v647
      %v649 = vlaneseq
      %v650 = vshrl.u32 %v649, 7
      %v651 = vsub.s32 %v648, %v650
      %v652 = vrot.slane %v638, %v651
      %653 = vrot.lane.b32.xlu0 %v652, 127
      %v654 = vpop.permute.xlu0 %653
      %v656 = vsel %vm192, %v644, 0
      %v659 = vsel %vm196, %v654, 0
      %661 = vmatprep.subr.bf16.mxu0 0
      %662 = vmatpush1.bf16.msra.mxu0 %v659
      %663 = vmatprep.subr.bf16.mxu0 0
      %664 = vmatpush1.bf16.msra.mxu0 0
      %665 = vmatprep.subr.bf16.mxu0 0
      %666 = vmatpush1.bf16.msra.mxu0 0
      %667 = vmatprep.subr.bf16.mxu0 0
      %668 = vmatpush1.bf16.msra.mxu0 0
      %669 = vmatprep.subr.bf16.mxu0 0
      %670 = vmatpush1.bf16.msra.mxu0 0
      %671 = vmatprep.subr.bf16.mxu0 0
      %672 = vmatpush1.bf16.msra.mxu0 0
      %673 = vmatprep.subr.bf16.mxu0 0
      %674 = vmatpush1.bf16.msra.mxu0 0
      %675 = vmatprep.subr.bf16.mxu0 0
      %676 = vmatpush1.bf16.msra.mxu0 0
      %677 = vmatprep.subr.bf16.mxu0 0
      %678 = vmatpush1.bf16.msra.mxu0 0
      %679 = vmatprep.subr.bf16.mxu0 0
      %680 = vmatpush1.bf16.msra.mxu0 0
      %681 = vmatprep.subr.bf16.mxu0 0
      %682 = vmatpush1.bf16.msra.mxu0 0
      %683 = vmatprep.subr.bf16.mxu0 0
      %684 = vmatpush1.bf16.msra.mxu0 0
      %685 = vmatprep.subr.bf16.mxu0 0
      %686 = vmatpush1.bf16.msra.mxu0 0
      %687 = vmatprep.subr.bf16.mxu0 0
      %688 = vmatpush1.bf16.msra.mxu0 0
      %689 = vmatprep.subr.bf16.mxu0 0
      %690 = vmatpush1.bf16.msra.mxu0 0
      %691 = vmatprep.subr.bf16.mxu0 0
      %692 = vmatpush1.bf16.msra.mxu0 0
      %693 = vmatprep.mubr.bf16.mxu0 0
      %694 = vmatmul.mubr.bf16.gmra.mrb[0].mxu0 %v656
      %v695 = vpop.f32.mrb[0].mxu0
      %v696 = vadd.f32 0.0, %v695
      %v697 = vpop.f32.mrb[0].mxu0
      %v698 = vpop.f32.mrb[0].mxu0
      %v699 = vpop.f32.mrb[0].mxu0
      %700 = vdwg.mxu0
      %v701 = vadd.f32 %v637, %v696
      %v702 = vld [vmem:[%s473] sm:$0x3]
      %v703 = vld [vmem:[%s1] sm:$0xf]
      %v705 = vunpack.c.l.b16 %v703
      %v706 = vpack.c.b16 %v705, %v705
      %707 = vrot.lane.b32.xlu0 %v706, 92
      %v708 = vpop.permute.xlu0 %707
      %v711 = vunpack.c.l.s4 1983009808
      %v712 = vunpack.c.0.s8 %v711
      %v713 = vlaneseq
      %v714 = vshrl.u32 %v713, 7
      %v715 = vsub.s32 %v712, %v714
      %v716 = vrot.slane %v702, %v715
      %717 = vrot.lane.b32.xlu0 %v716, 126
      %v718 = vpop.permute.xlu0 %717
      %v720 = vsel %vm192, %v708, 0
      %v723 = vsel %vm196, %v718, 0
      %725 = vmatprep.subr.bf16.mxu0 0
      %726 = vmatpush1.bf16.msra.mxu0 %v723
      %727 = vmatprep.subr.bf16.mxu0 0
      %728 = vmatpush1.bf16.msra.mxu0 0
      %729 = vmatprep.subr.bf16.mxu0 0
      %730 = vmatpush1.bf16.msra.mxu0 0
      %731 = vmatprep.subr.bf16.mxu0 0
      %732 = vmatpush1.bf16.msra.mxu0 0
      %733 = vmatprep.subr.bf16.mxu0 0
      %734 = vmatpush1.bf16.msra.mxu0 0
      %735 = vmatprep.subr.bf16.mxu0 0
      %736 = vmatpush1.bf16.msra.mxu0 0
      %737 = vmatprep.subr.bf16.mxu0 0
      %738 = vmatpush1.bf16.msra.mxu0 0
      %739 = vmatprep.subr.bf16.mxu0 0
      %740 = vmatpush1.bf16.msra.mxu0 0
      %741 = vmatprep.subr.bf16.mxu0 0
      %742 = vmatpush1.bf16.msra.mxu0 0
      %743 = vmatprep.subr.bf16.mxu0 0
      %744 = vmatpush1.bf16.msra.mxu0 0
      %745 = vmatprep.subr.bf16.mxu0 0
      %746 = vmatpush1.bf16.msra.mxu0 0
      %747 = vmatprep.subr.bf16.mxu0 0
      %748 = vmatpush1.bf16.msra.mxu0 0
      %749 = vmatprep.subr.bf16.mxu0 0
      %750 = vmatpush1.bf16.msra.mxu0 0
      %751 = vmatprep.subr.bf16.mxu0 0
      %752 = vmatpush1.bf16.msra.mxu0 0
      %753 = vmatprep.subr.bf16.mxu0 0
      %754 = vmatpush1.bf16.msra.mxu0 0
      %755 = vmatprep.subr.bf16.mxu0 0
      %756 = vmatpush1.bf16.msra.mxu0 0
      %757 = vmatprep.mubr.bf16.mxu0 0
      %758 = vmatmul.mubr.bf16.gmra.mrb[0].mxu0 %v720
      %v759 = vpop.f32.mrb[0].mxu0
      %v760 = vadd.f32 0.0, %v759
      %v761 = vpop.f32.mrb[0].mxu0
      %v762 = vpop.f32.mrb[0].mxu0
      %v763 = vpop.f32.mrb[0].mxu0
      %764 = vdwg.mxu0
      %v765 = vadd.f32 %v701, %v760
      %v766 = vld [vmem:[%s176] sm:$0x3]
      %v767 = vld [vmem:[%s1] sm:$0xf]
      %v769 = vunpack.c.l.b16 %v767
      %v770 = vpack.c.b16 %v769, %v769
      %771 = vrot.lane.b32.xlu0 %v770, 88
      %v772 = vpop.permute.xlu0 %771
      %v775 = vunpack.c.l.s4 1983009808
      %v776 = vunpack.c.0.s8 %v775
      %v777 = vlaneseq
      %v778 = vshrl.u32 %v777, 7
      %v779 = vsub.s32 %v776, %v778
      %v780 = vrot.slane %v766, %v779
      %781 = vrot.lane.b32.xlu0 %v780, 118
      %v782 = vpop.permute.xlu0 %781
      %v784 = vsel %vm192, %v772, 0
      %v787 = vsel %vm196, %v782, 0
      %789 = vmatprep.subr.bf16.mxu0 0
      %790 = vmatpush1.bf16.msra.mxu0 %v787
      %791 = vmatprep.subr.bf16.mxu0 0
      %792 = vmatpush1.bf16.msra.mxu0 0
      %793 = vmatprep.subr.bf16.mxu0 0
      %794 = vmatpush1.bf16.msra.mxu0 0
      %795 = vmatprep.subr.bf16.mxu0 0
      %796 = vmatpush1.bf16.msra.mxu0 0
      %797 = vmatprep.subr.bf16.mxu0 0
      %798 = vmatpush1.bf16.msra.mxu0 0
      %799 = vmatprep.subr.bf16.mxu0 0
      %800 = vmatpush1.bf16.msra.mxu0 0
      %801 = vmatprep.subr.bf16.mxu0 0
      %802 = vmatpush1.bf16.msra.mxu0 0
      %803 = vmatprep.subr.bf16.mxu0 0
      %804 = vmatpush1.bf16.msra.mxu0 0
      %805 = vmatprep.subr.bf16.mxu0 0
      %806 = vmatpush1.bf16.msra.mxu0 0
      %807 = vmatprep.subr.bf16.mxu0 0
      %808 = vmatpush1.bf16.msra.mxu0 0
      %809 = vmatprep.subr.bf16.mxu0 0
      %810 = vmatpush1.bf16.msra.mxu0 0
      %811 = vmatprep.subr.bf16.mxu0 0
      %812 = vmatpush1.bf16.msra.mxu0 0
      %813 = vmatprep.subr.bf16.mxu0 0
      %814 = vmatpush1.bf16.msra.mxu0 0
      %815 = vmatprep.subr.bf16.mxu0 0
      %816 = vmatpush1.bf16.msra.mxu0 0
      %817 = vmatprep.subr.bf16.mxu0 0
      %818 = vmatpush1.bf16.msra.mxu0 0
      %819 = vmatprep.subr.bf16.mxu0 0
      %820 = vmatpush1.bf16.msra.mxu0 0
      %821 = vmatprep.mubr.bf16.mxu0 0
      %822 = vmatmul.mubr.bf16.gmra.mrb[0].mxu0 %v784
      %v823 = vpop.f32.mrb[0].mxu0
      %v824 = vadd.f32 0.0, %v823
      %v825 = vpop.f32.mrb[0].mxu0
      %v826 = vpop.f32.mrb[0].mxu0
      %v827 = vpop.f32.mrb[0].mxu0
      %828 = vdwg.mxu0
      %v829 = vadd.f32 %v765, %v824
      %v830 = vld [vmem:[%s185] sm:$0x3]
      %v831 = vld [vmem:[%s1] sm:$0xf]
      %v833 = vunpack.c.l.b16 %v831
      %v834 = vpack.c.b16 %v833, %v833
      %835 = vrot.lane.b32.xlu0 %v834, 84
      %v836 = vpop.permute.xlu0 %835
      %v839 = vunpack.c.l.s4 1983009808
      %v840 = vunpack.c.0.s8 %v839
      %v841 = vlaneseq
      %v842 = vshrl.u32 %v841, 7
      %v843 = vsub.s32 %v840, %v842
      %v844 = vrot.slane %v830, %v843
      %845 = vrot.lane.b32.xlu0 %v844, 118
      %v846 = vpop.permute.xlu0 %845
      %v848 = vsel %vm192, %v836, 0
      %v851 = vsel %vm196, %v846, 0
      %853 = vmatprep.subr.bf16.mxu0 0
      %854 = vmatpush1.bf16.msra.mxu0 %v851
      %855 = vmatprep.subr.bf16.mxu0 0
      %856 = vmatpush1.bf16.msra.mxu0 0
      %857 = vmatprep.subr.bf16.mxu0 0
      %858 = vmatpush1.bf16.msra.mxu0 0
      %859 = vmatprep.subr.bf16.mxu0 0
      %860 = vmatpush1.bf16.msra.mxu0 0
      %861 = vmatprep.subr.bf16.mxu0 0
      %862 = vmatpush1.bf16.msra.mxu0 0
      %863 = vmatprep.subr.bf16.mxu0 0
      %864 = vmatpush1.bf16.msra.mxu0 0
      %865 = vmatprep.subr.bf16.mxu0 0
      %866 = vmatpush1.bf16.msra.mxu0 0
      %867 = vmatprep.subr.bf16.mxu0 0
      %868 = vmatpush1.bf16.msra.mxu0 0
      %869 = vmatprep.subr.bf16.mxu0 0
      %870 = vmatpush1.bf16.msra.mxu0 0
      %871 = vmatprep.subr.bf16.mxu0 0
      %872 = vmatpush1.bf16.msra.mxu0 0
      %873 = vmatprep.subr.bf16.mxu0 0
      %874 = vmatpush1.bf16.msra.mxu0 0
      %875 = vmatprep.subr.bf16.mxu0 0
      %876 = vmatpush1.bf16.msra.mxu0 0
      %877 = vmatprep.subr.bf16.mxu0 0
      %878 = vmatpush1.bf16.msra.mxu0 0
      %879 = vmatprep.subr.bf16.mxu0 0
      %880 = vmatpush1.bf16.msra.mxu0 0
      %881 = vmatprep.subr.bf16.mxu0 0
      %882 = vmatpush1.bf16.msra.mxu0 0
      %883 = vmatprep.subr.bf16.mxu0 0
      %884 = vmatpush1.bf16.msra.mxu0 0
      %885 = vmatprep.mubr.bf16.mxu0 0
      %886 = vmatmul.mubr.bf16.gmra.mrb[0].mxu0 %v848
      %v887 = vpop.f32.mrb[0].mxu0
      %v888 = vadd.f32 0.0, %v887
      %v889 = vpop.f32.mrb[0].mxu0
      %v890 = vpop.f32.mrb[0].mxu0
      %v891 = vpop.f32.mrb[0].mxu0
      %892 = vdwg.mxu0
      %v893 = vadd.f32 %v829, %v888
      %v894 = vld [vmem:[%s176] sm:$0x3]
      %v895 = vld [vmem:[%s1] sm:$0xf]
      %v897 = vunpack.c.l.b16 %v895
      %v898 = vpack.c.b16 %v897, %v897
      %899 = vrot.lane.b32.xlu0 %v898, 80
      %v900 = vpop.permute.xlu0 %899
      %v903 = vunpack.c.l.s4 1983009808
      %v904 = vunpack.c.0.s8 %v903
      %v905 = vlaneseq
      %v906 = vshrl.u32 %v905, 7
      %v907 = vsub.s32 %v904, %v906
      %v908 = vrot.slane %v894, %v907
      %909 = vrot.lane.b32.xlu0 %v908, 117
      %v910 = vpop.permute.xlu0 %909
      %v912 = vsel %vm192, %v900, 0
      %v915 = vsel %vm196, %v910, 0
      %917 = vmatprep.subr.bf16.mxu0 0
      %918 = vmatpush1.bf16.msra.mxu0 %v915
      %919 = vmatprep.subr.bf16.mxu0 0
      %920 = vmatpush1.bf16.msra.mxu0 0
      %921 = vmatprep.subr.bf16.mxu0 0
      %922 = vmatpush1.bf16.msra.mxu0 0
      %923 = vmatprep.subr.bf16.mxu0 0
      %924 = vmatpush1.bf16.msra.mxu0 0
      %925 = vmatprep.subr.bf16.mxu0 0
      %926 = vmatpush1.bf16.msra.mxu0 0
      %927 = vmatprep.subr.bf16.mxu0 0
      %928 = vmatpush1.bf16.msra.mxu0 0
      %929 = vmatprep.subr.bf16.mxu0 0
      %930 = vmatpush1.bf16.msra.mxu0 0
      %931 = vmatprep.subr.bf16.mxu0 0
      %932 = vmatpush1.bf16.msra.mxu0 0
      %933 = vmatprep.subr.bf16.mxu0 0
      %934 = vmatpush1.bf16.msra.mxu0 0
      %935 = vmatprep.subr.bf16.mxu0 0
      %936 = vmatpush1.bf16.msra.mxu0 0
      %937 = vmatprep.subr.bf16.mxu0 0
      %938 = vmatpush1.bf16.msra.mxu0 0
      %939 = vmatprep.subr.bf16.mxu0 0
      %940 = vmatpush1.bf16.msra.mxu0 0
      %941 = vmatprep.subr.bf16.mxu0 0
      %942 = vmatpush1.bf16.msra.mxu0 0
      %943 = vmatprep.subr.bf16.mxu0 0
      %944 = vmatpush1.bf16.msra.mxu0 0
      %945 = vmatprep.subr.bf16.mxu0 0
      %946 = vmatpush1.bf16.msra.mxu0 0
      %947 = vmatprep.subr.bf16.mxu0 0
      %948 = vmatpush1.bf16.msra.mxu0 0
      %949 = vmatprep.mubr.bf16.mxu0 0
      %950 = vmatmul.mubr.bf16.gmra.mrb[0].mxu0 %v912
      %v951 = vpop.f32.mrb[0].mxu0
      %v952 = vadd.f32 0.0, %v951
      %v953 = vpop.f32.mrb[0].mxu0
      %v954 = vpop.f32.mrb[0].mxu0
      %v955 = vpop.f32.mrb[0].mxu0
      %956 = vdwg.mxu0
      %v957 = vadd.f32 %v893, %v952
      %v958 = vld [vmem:[%s185] sm:$0x3]
      %v959 = vld [vmem:[%s1] sm:$0xf]
      %v961 = vunpack.c.l.b16 %v959
      %v962 = vpack.c.b16 %v961, %v961
      %963 = vrot.lane.b32.xlu0 %v962, 76
      %v964 = vpop.permute.xlu0 %963
      %v967 = vunpack.c.l.s4 1983009808
      %v968 = vunpack.c.0.s8 %v967
      %v969 = vlaneseq
      %v970 = vshrl.u32 %v969, 7
      %v971 = vsub.s32 %v968, %v970
      %v972 = vrot.slane %v958, %v971
      %973 = vrot.lane.b32.xlu0 %v972, 117
      %v974 = vpop.permute.xlu0 %973
      %v976 = vsel %vm192, %v964, 0
      %v979 = vsel %vm196, %v974, 0
      %981 = vmatprep.subr.bf16.mxu0 0
      %982 = vmatpush1.bf16.msra.mxu0 %v979
      %983 = vmatprep.subr.bf16.mxu0 0
      %984 = vmatpush1.bf16.msra.mxu0 0
      %985 = vmatprep.subr.bf16.mxu0 0
      %986 = vmatpush1.bf16.msra.mxu0 0
      %987 = vmatprep.subr.bf16.mxu0 0
      %988 = vmatpush1.bf16.msra.mxu0 0
      %989 = vmatprep.subr.bf16.mxu0 0
      %990 = vmatpush1.bf16.msra.mxu0 0
      %991 = vmatprep.subr.bf16.mxu0 0
      %992 = vmatpush1.bf16.msra.mxu0 0
      %993 = vmatprep.subr.bf16.mxu0 0
      %994 = vmatpush1.bf16.msra.mxu0 0
      %995 = vmatprep.subr.bf16.mxu0 0
      %996 = vmatpush1.bf16.msra.mxu0 0
      %997 = vmatprep.subr.bf16.mxu0 0
      %998 = vmatpush1.bf16.msra.mxu0 0
      %999 = vmatprep.subr.bf16.mxu0 0
      %1000 = vmatpush1.bf16.msra.mxu0 0
      %1001 = vmatprep.subr.bf16.mxu0 0
      %1002 = vmatpush1.bf16.msra.mxu0 0
      %1003 = vmatprep.subr.bf16.mxu0 0
      %1004 = vmatpush1.bf16.msra.mxu0 0
      %1005 = vmatprep.subr.bf16.mxu0 0
      %1006 = vmatpush1.bf16.msra.mxu0 0
      %1007 = vmatprep.subr.bf16.mxu0 0
      %1008 = vmatpush1.bf16.msra.mxu0 0
      %1009 = vmatprep.subr.bf16.mxu0 0
      %1010 = vmatpush1.bf16.msra.mxu0 0
      %1011 = vmatprep.subr.bf16.mxu0 0
      %1012 = vmatpush1.bf16.msra.mxu0 0
      %1013 = vmatprep.mubr.bf16.mxu0 0
      %1014 = vmatmul.mubr.bf16.gmra.mrb[0].mxu0 %v976
      %v1015 = vpop.f32.mrb[0].mxu0
      %v1016 = vadd.f32 0.0, %v1015
      %v1017 = vpop.f32.mrb[0].mxu0
      %v1018 = vpop.f32.mrb[0].mxu0
      %v1019 = vpop.f32.mrb[0].mxu0
      %1020 = vdwg.mxu0
      %v1021 = vadd.f32 %v957, %v1016
      %v1022 = vld [vmem:[%s176] sm:$0x3]
      %v1023 = vld [vmem:[%s1] sm:$0xf]
      %v1025 = vunpack.c.l.b16 %v1023
      %v1026 = vpack.c.b16 %v1025, %v1025
      %1027 = vrot.lane.b32.xlu0 %v1026, 72
      %v1028 = vpop.permute.xlu0 %1027
      %v1031 = vunpack.c.l.s4 1983009808
      %v1032 = vunpack.c.0.s8 %v1031
      %v1033 = vlaneseq
      %v1034 = vshrl.u32 %v1033, 7
      %v1035 = vsub.s32 %v1032, %v1034
      %v1036 = vrot.slane %v1022, %v1035
      %1037 = vrot.lane.b32.xlu0 %v1036, 116
      %v1038 = vpop.permute.xlu0 %1037
      %v1040 = vsel %vm192, %v1028, 0
      %v1043 = vsel %vm196, %v1038, 0
      %1045 = vmatprep.subr.bf16.mxu0 0
      %1046 = vmatpush1.bf16.msra.mxu0 %v1043
      %1047 = vmatprep.subr.bf16.mxu0 0
      %1048 = vmatpush1.bf16.msra.mxu0 0
      %1049 = vmatprep.subr.bf16.mxu0 0
      %1050 = vmatpush1.bf16.msra.mxu0 0
      %1051 = vmatprep.subr.bf16.mxu0 0
      %1052 = vmatpush1.bf16.msra.mxu0 0
      %1053 = vmatprep.subr.bf16.mxu0 0
      %1054 = vmatpush1.bf16.msra.mxu0 0
      %1055 = vmatprep.subr.bf16.mxu0 0
      %1056 = vmatpush1.bf16.msra.mxu0 0
      %1057 = vmatprep.subr.bf16.mxu0 0
      %1058 = vmatpush1.bf16.msra.mxu0 0
      %1059 = vmatprep.subr.bf16.mxu0 0
      %1060 = vmatpush1.bf16.msra.mxu0 0
      %1061 = vmatprep.subr.bf16.mxu0 0
      %1062 = vmatpush1.bf16.msra.mxu0 0
      %1063 = vmatprep.subr.bf16.mxu0 0
      %1064 = vmatpush1.bf16.msra.mxu0 0
      %1065 = vmatprep.subr.bf16.mxu0 0
      %1066 = vmatpush1.bf16.msra.mxu0 0
      %1067 = vmatprep.subr.bf16.mxu0 0
      %1068 = vmatpush1.bf16.msra.mxu0 0
      %1069 = vmatprep.subr.bf16.mxu0 0
      %1070 = vmatpush1.bf16.msra.mxu0 0
      %1071 = vmatprep.subr.bf16.mxu0 0
      %1072 = vmatpush1.bf16.msra.mxu0 0
      %1073 = vmatprep.subr.bf16.mxu0 0
      %1074 = vmatpush1.bf16.msra.mxu0 0
      %1075 = vmatprep.subr.bf16.mxu0 0
      %1076 = vmatpush1.bf16.msra.mxu0 0
      %1077 = vmatprep.mubr.bf16.mxu0 0
      %1078 = vmatmul.mubr.bf16.gmra.mrb[0].mxu0 %v1040
      %v1079 = vpop.f32.mrb[0].mxu0
      %v1080 = vadd.f32 0.0, %v1079
      %v1081 = vpop.f32.mrb[0].mxu0
      %v1082 = vpop.f32.mrb[0].mxu0
      %v1083 = vpop.f32.mrb[0].mxu0
      %1084 = vdwg.mxu0
      %v1085 = vadd.f32 %v1021, %v1080
      %v1086 = vld [vmem:[%s473] sm:$0x3]
      %v1087 = vld [vmem:[%s1] sm:$0xf]
      %v1089 = vunpack.c.l.b16 %v1087
      %v1090 = vpack.c.b16 %v1089, %v1089
      %1091 = vrot.lane.b32.xlu0 %v1090, 68
      %v1092 = vpop.permute.xlu0 %1091
      %v1095 = vunpack.c.l.s4 1983009808
      %v1096 = vunpack.c.0.s8 %v1095
      %v1097 = vlaneseq
      %v1098 = vshrl.u32 %v1097, 7
      %v1099 = vsub.s32 %v1096, %v1098
      %v1100 = vrot.slane %v1086, %v1099
      %1101 = vrot.lane.b32.xlu0 %v1100, 118
      %v1102 = vpop.permute.xlu0 %1101
      %v1104 = vsel %vm192, %v1092, 0
      %v1107 = vsel %vm196, %v1102, 0
      %1109 = vmatprep.subr.bf16.mxu0 0
      %1110 = vmatpush1.bf16.msra.mxu0 %v1107
      %1111 = vmatprep.subr.bf16.mxu0 0
      %1112 = vmatpush1.bf16.msra.mxu0 0
      %1113 = vmatprep.subr.bf16.mxu0 0
      %1114 = vmatpush1.bf16.msra.mxu0 0
      %1115 = vmatprep.subr.bf16.mxu0 0
      %1116 = vmatpush1.bf16.msra.mxu0 0
      %1117 = vmatprep.subr.bf16.mxu0 0
      %1118 = vmatpush1.bf16.msra.mxu0 0
      %1119 = vmatprep.subr.bf16.mxu0 0
      %1120 = vmatpush1.bf16.msra.mxu0 0
      %1121 = vmatprep.subr.bf16.mxu0 0
      %1122 = vmatpush1.bf16.msra.mxu0 0
      %1123 = vmatprep.subr.bf16.mxu0 0
      %1124 = vmatpush1.bf16.msra.mxu0 0
      %1125 = vmatprep.subr.bf16.mxu0 0
      %1126 = vmatpush1.bf16.msra.mxu0 0
      %1127 = vmatprep.subr.bf16.mxu0 0
      %1128 = vmatpush1.bf16.msra.mxu0 0
      %1129 = vmatprep.subr.bf16.mxu0 0
      %1130 = vmatpush1.bf16.msra.mxu0 0
      %1131 = vmatprep.subr.bf16.mxu0 0
      %1132 = vmatpush1.bf16.msra.mxu0 0
      %1133 = vmatprep.subr.bf16.mxu0 0
      %1134 = vmatpush1.bf16.msra.mxu0 0
      %1135 = vmatprep.subr.bf16.mxu0 0
      %1136 = vmatpush1.bf16.msra.mxu0 0
      %1137 = vmatprep.subr.bf16.mxu0 0
      %1138 = vmatpush1.bf16.msra.mxu0 0
      %1139 = vmatprep.subr.bf16.mxu0 0
      %1140 = vmatpush1.bf16.msra.mxu0 0
      %1141 = vmatprep.mubr.bf16.mxu0 0
      %1142 = vmatmul.mubr.bf16.gmra.mrb[0].mxu0 %v1104
      %v1143 = vpop.f32.mrb[0].mxu0
      %v1144 = vadd.f32 0.0, %v1143
      %v1145 = vpop.f32.mrb[0].mxu0
      %v1146 = vpop.f32.mrb[0].mxu0
      %v1147 = vpop.f32.mrb[0].mxu0
      %1148 = vdwg.mxu0
      %v1149 = vadd.f32 %v1085, %v1144
      %v1150 = vld [vmem:[%s528] sm:$0x3]
      %v1151 = vld [vmem:[%s1] sm:$0xf]
      %v1153 = vunpack.c.l.b16 %v1151
      %v1154 = vpack.c.b16 %v1153, %v1153
      %1155 = vrot.lane.b32.xlu0 %v1154, 64
      %v1156 = vpop.permute.xlu0 %1155
      %v1159 = vunpack.c.l.s4 1983009808
      %v1160 = vunpack.c.0.s8 %v1159
      %v1161 = vlaneseq
      %v1162 = vshrl.u32 %v1161, 7
      %v1163 = vsub.s32 %v1160, %v1162
      %v1164 = vrot.slane %v1150, %v1163
      %1165 = vrot.lane.b32.xlu0 %v1164, 118
      %v1166 = vpop.permute.xlu0 %1165
      %v1168 = vsel %vm192, %v1156, 0
      %v1171 = vsel %vm196, %v1166, 0
      %1173 = vmatprep.subr.bf16.mxu0 0
      %1174 = vmatpush1.bf16.msra.mxu0 %v1171
      %1175 = vmatprep.subr.bf16.mxu0 0
      %1176 = vmatpush1.bf16.msra.mxu0 0
      %1177 = vmatprep.subr.bf16.mxu0 0
      %1178 = vmatpush1.bf16.msra.mxu0 0
      %1179 = vmatprep.subr.bf16.mxu0 0
      %1180 = vmatpush1.bf16.msra.mxu0 0
      %1181 = vmatprep.subr.bf16.mxu0 0
      %1182 = vmatpush1.bf16.msra.mxu0 0
      %1183 = vmatprep.subr.bf16.mxu0 0
      %1184 = vmatpush1.bf16.msra.mxu0 0
      %1185 = vmatprep.subr.bf16.mxu0 0
      %1186 = vmatpush1.bf16.msra.mxu0 0
      %1187 = vmatprep.subr.bf16.mxu0 0
      %1188 = vmatpush1.bf16.msra.mxu0 0
      %1189 = vmatprep.subr.bf16.mxu0 0
      %1190 = vmatpush1.bf16.msra.mxu0 0
      %1191 = vmatprep.subr.bf16.mxu0 0
      %1192 = vmatpush1.bf16.msra.mxu0 0
      %1193 = vmatprep.subr.bf16.mxu0 0
      %1194 = vmatpush1.bf16.msra.mxu0 0
      %1195 = vmatprep.subr.bf16.mxu0 0
      %1196 = vmatpush1.bf16.msra.mxu0 0
      %1197 = vmatprep.subr.bf16.mxu0 0
      %1198 = vmatpush1.bf16.msra.mxu0 0
      %1199 = vmatprep.subr.bf16.mxu0 0
      %1200 = vmatpush1.bf16.msra.mxu0 0
      %1201 = vmatprep.subr.bf16.mxu0 0
      %1202 = vmatpush1.bf16.msra.mxu0 0
      %1203 = vmatprep.subr.bf16.mxu0 0
      %1204 = vmatpush1.bf16.msra.mxu0 0
      %1205 = vmatprep.mubr.bf16.mxu0 0
      %1206 = vmatmul.mubr.bf16.gmra.mrb[0].mxu0 %v1168
      %v1207 = vpop.f32.mrb[0].mxu0
      %v1208 = vadd.f32 0.0, %v1207
      %v1209 = vpop.f32.mrb[0].mxu0
      %v1210 = vpop.f32.mrb[0].mxu0
      %v1211 = vpop.f32.mrb[0].mxu0
      %1212 = vdwg.mxu0
      %v1213 = vadd.f32 %v1149, %v1208
      %v1214 = vld [vmem:[%s473] sm:$0x3]
      %v1215 = vld [vmem:[%s1] sm:$0xf]
      %v1217 = vunpack.c.l.b16 %v1215
      %v1218 = vpack.c.b16 %v1217, %v1217
      %1219 = vrot.lane.b32.xlu0 %v1218, 60
      %v1220 = vpop.permute.xlu0 %1219
      %v1223 = vunpack.c.l.s4 1983009808
      %v1224 = vunpack.c.0.s8 %v1223
      %v1225 = vlaneseq
      %v1226 = vshrl.u32 %v1225, 7
      %v1227 = vsub.s32 %v1224, %v1226
      %v1228 = vrot.slane %v1214, %v1227
      %1229 = vrot.lane.b32.xlu0 %v1228, 117
      %v1230 = vpop.permute.xlu0 %1229
      %v1232 = vsel %vm192, %v1220, 0
      %v1235 = vsel %vm196, %v1230, 0
      %1237 = vmatprep.subr.bf16.mxu0 0
      %1238 = vmatpush1.bf16.msra.mxu0 %v1235
      %1239 = vmatprep.subr.bf16.mxu0 0
      %1240 = vmatpush1.bf16.msra.mxu0 0
      %1241 = vmatprep.subr.bf16.mxu0 0
      %1242 = vmatpush1.bf16.msra.mxu0 0
      %1243 = vmatprep.subr.bf16.mxu0 0
      %1244 = vmatpush1.bf16.msra.mxu0 0
      %1245 = vmatprep.subr.bf16.mxu0 0
      %1246 = vmatpush1.bf16.msra.mxu0 0
      %1247 = vmatprep.subr.bf16.mxu0 0
      %1248 = vmatpush1.bf16.msra.mxu0 0
      %1249 = vmatprep.subr.bf16.mxu0 0
      %1250 = vmatpush1.bf16.msra.mxu0 0
      %1251 = vmatprep.subr.bf16.mxu0 0
      %1252 = vmatpush1.bf16.msra.mxu0 0
      %1253 = vmatprep.subr.bf16.mxu0 0
      %1254 = vmatpush1.bf16.msra.mxu0 0
      %1255 = vmatprep.subr.bf16.mxu0 0
      %1256 = vmatpush1.bf16.msra.mxu0 0
      %1257 = vmatprep.subr.bf16.mxu0 0
      %1258 = vmatpush1.bf16.msra.mxu0 0
      %1259 = vmatprep.subr.bf16.mxu0 0
      %1260 = vmatpush1.bf16.msra.mxu0 0
      %1261 = vmatprep.subr.bf16.mxu0 0
      %1262 = vmatpush1.bf16.msra.mxu0 0
      %1263 = vmatprep.subr.bf16.mxu0 0
      %1264 = vmatpush1.bf16.msra.mxu0 0
      %1265 = vmatprep.subr.bf16.mxu0 0
      %1266 = vmatpush1.bf16.msra.mxu0 0
      %1267 = vmatprep.subr.bf16.mxu0 0
      %1268 = vmatpush1.bf16.msra.mxu0 0
      %1269 = vmatprep.mubr.bf16.mxu0 0
      %1270 = vmatmul.mubr.bf16.gmra.mrb[0].mxu0 %v1232
      %v1271 = vpop.f32.mrb[0].mxu0
      %v1272 = vadd.f32 0.0, %v1271
      %v1273 = vpop.f32.mrb[0].mxu0
      %v1274 = vpop.f32.mrb[0].mxu0
      %v1275 = vpop.f32.mrb[0].mxu0
      %1276 = vdwg.mxu0
      %v1277 = vadd.f32 %v1213, %v1272
      %v1278 = vld [vmem:[%s528] sm:$0x3]
      %v1279 = vld [vmem:[%s1] sm:$0xf]
      %v1281 = vunpack.c.l.b16 %v1279
      %v1282 = vpack.c.b16 %v1281, %v1281
      %1283 = vrot.lane.b32.xlu0 %v1282, 56
      %v1284 = vpop.permute.xlu0 %1283
      %v1287 = vunpack.c.l.s4 1983009808
      %v1288 = vunpack.c.0.s8 %v1287
      %v1289 = vlaneseq
      %v1290 = vshrl.u32 %v1289, 7
      %v1291 = vsub.s32 %v1288, %v1290
      %v1292 = vrot.slane %v1278, %v1291
      %1293 = vrot.lane.b32.xlu0 %v1292, 117
      %v1294 = vpop.permute.xlu0 %1293
      %v1296 = vsel %vm192, %v1284, 0
      %v1299 = vsel %vm196, %v1294, 0
      %1301 = vmatprep.subr.bf16.mxu0 0
      %1302 = vmatpush1.bf16.msra.mxu0 %v1299
      %1303 = vmatprep.subr.bf16.mxu0 0
      %1304 = vmatpush1.bf16.msra.mxu0 0
      %1305 = vmatprep.subr.bf16.mxu0 0
      %1306 = vmatpush1.bf16.msra.mxu0 0
      %1307 = vmatprep.subr.bf16.mxu0 0
      %1308 = vmatpush1.bf16.msra.mxu0 0
      %1309 = vmatprep.subr.bf16.mxu0 0
      %1310 = vmatpush1.bf16.msra.mxu0 0
      %1311 = vmatprep.subr.bf16.mxu0 0
      %1312 = vmatpush1.bf16.msra.mxu0 0
      %1313 = vmatprep.subr.bf16.mxu0 0
      %1314 = vmatpush1.bf16.msra.mxu0 0
      %1315 = vmatprep.subr.bf16.mxu0 0
      %1316 = vmatpush1.bf16.msra.mxu0 0
      %1317 = vmatprep.subr.bf16.mxu0 0
      %1318 = vmatpush1.bf16.msra.mxu0 0
      %1319 = vmatprep.subr.bf16.mxu0 0
      %1320 = vmatpush1.bf16.msra.mxu0 0
      %1321 = vmatprep.subr.bf16.mxu0 0
      %1322 = vmatpush1.bf16.msra.mxu0 0
      %1323 = vmatprep.subr.bf16.mxu0 0
      %1324 = vmatpush1.bf16.msra.mxu0 0
      %1325 = vmatprep.subr.bf16.mxu0 0
      %1326 = vmatpush1.bf16.msra.mxu0 0
      %1327 = vmatprep.subr.bf16.mxu0 0
      %1328 = vmatpush1.bf16.msra.mxu0 0
      %1329 = vmatprep.subr.bf16.mxu0 0
      %1330 = vmatpush1.bf16.msra.mxu0 0
      %1331 = vmatprep.subr.bf16.mxu0 0
      %1332 = vmatpush1.bf16.msra.mxu0 0
      %1333 = vmatprep.mubr.bf16.mxu0 0
      %1334 = vmatmul.mubr.bf16.gmra.mrb[0].mxu0 %v1296
      %v1335 = vpop.f32.mrb[0].mxu0
      %v1336 = vadd.f32 0.0, %v1335
      %v1337 = vpop.f32.mrb[0].mxu0
      %v1338 = vpop.f32.mrb[0].mxu0
      %v1339 = vpop.f32.mrb[0].mxu0
      %1340 = vdwg.mxu0
      %v1341 = vadd.f32 %v1277, %v1336
      %v1342 = vld [vmem:[%s473] sm:$0x3]
      %v1343 = vld [vmem:[%s1] sm:$0xf]
      %v1345 = vunpack.c.l.b16 %v1343
      %v1346 = vpack.c.b16 %v1345, %v1345
      %1347 = vrot.lane.b32.xlu0 %v1346, 52
      %v1348 = vpop.permute.xlu0 %1347
      %v1351 = vunpack.c.l.s4 1983009808
      %v1352 = vunpack.c.0.s8 %v1351
      %v1353 = vlaneseq
      %v1354 = vshrl.u32 %v1353, 7
      %v1355 = vsub.s32 %v1352, %v1354
      %v1356 = vrot.slane %v1342, %v1355
      %1357 = vrot.lane.b32.xlu0 %v1356, 116
      %v1358 = vpop.permute.xlu0 %1357
      %v1360 = vsel %vm192, %v1348, 0
      %v1363 = vsel %vm196, %v1358, 0
      %1365 = vmatprep.subr.bf16.mxu0 0
      %1366 = vmatpush1.bf16.msra.mxu0 %v1363
      %1367 = vmatprep.subr.bf16.mxu0 0
      %1368 = vmatpush1.bf16.msra.mxu0 0
      %1369 = vmatprep.subr.bf16.mxu0 0
      %1370 = vmatpush1.bf16.msra.mxu0 0
      %1371 = vmatprep.subr.bf16.mxu0 0
      %1372 = vmatpush1.bf16.msra.mxu0 0
      %1373 = vmatprep.subr.bf16.mxu0 0
      %1374 = vmatpush1.bf16.msra.mxu0 0
      %1375 = vmatprep.subr.bf16.mxu0 0
      %1376 = vmatpush1.bf16.msra.mxu0 0
      %1377 = vmatprep.subr.bf16.mxu0 0
      %1378 = vmatpush1.bf16.msra.mxu0 0
      %1379 = vmatprep.subr.bf16.mxu0 0
      %1380 = vmatpush1.bf16.msra.mxu0 0
      %1381 = vmatprep.subr.bf16.mxu0 0
      %1382 = vmatpush1.bf16.msra.mxu0 0
      %1383 = vmatprep.subr.bf16.mxu0 0
      %1384 = vmatpush1.bf16.msra.mxu0 0
      %1385 = vmatprep.subr.bf16.mxu0 0
      %1386 = vmatpush1.bf16.msra.mxu0 0
      %1387 = vmatprep.subr.bf16.mxu0 0
      %1388 = vmatpush1.bf16.msra.mxu0 0
      %1389 = vmatprep.subr.bf16.mxu0 0
      %1390 = vmatpush1.bf16.msra.mxu0 0
      %1391 = vmatprep.subr.bf16.mxu0 0
      %1392 = vmatpush1.bf16.msra.mxu0 0
      %1393 = vmatprep.subr.bf16.mxu0 0
      %1394 = vmatpush1.bf16.msra.mxu0 0
      %1395 = vmatprep.subr.bf16.mxu0 0
      %1396 = vmatpush1.bf16.msra.mxu0 0
      %1397 = vmatprep.mubr.bf16.mxu0 0
      %1398 = vmatmul.mubr.bf16.gmra.mrb[0].mxu0 %v1360
      %v1399 = vpop.f32.mrb[0].mxu0
      %v1400 = vadd.f32 0.0, %v1399
      %v1401 = vpop.f32.mrb[0].mxu0
      %v1402 = vpop.f32.mrb[0].mxu0
      %v1403 = vpop.f32.mrb[0].mxu0
      %1404 = vdwg.mxu0
      %v1405 = vadd.f32 %v1341, %v1400
      %v1406 = vld [vmem:[%s176] sm:$0x3]
      %v1407 = vld [vmem:[%s1] sm:$0xf]
      %v1409 = vunpack.c.l.b16 %v1407
      %v1410 = vpack.c.b16 %v1409, %v1409
      %1411 = vrot.lane.b32.xlu0 %v1410, 48
      %v1412 = vpop.permute.xlu0 %1411
      %v1415 = vunpack.c.l.s4 1983009808
      %v1416 = vunpack.c.0.s8 %v1415
      %v1417 = vlaneseq
      %v1418 = vshrl.u32 %v1417, 7
      %v1419 = vsub.s32 %v1416, %v1418
      %v1420 = vrot.slane %v1406, %v1419
      %1421 = vrot.lane.b32.xlu0 %v1420, 108
      %v1422 = vpop.permute.xlu0 %1421
      %v1424 = vsel %vm192, %v1412, 0
      %v1427 = vsel %vm196, %v1422, 0
      %1429 = vmatprep.subr.bf16.mxu0 0
      %1430 = vmatpush1.bf16.msra.mxu0 %v1427
      %1431 = vmatprep.subr.bf16.mxu0 0
      %1432 = vmatpush1.bf16.msra.mxu0 0
      %1433 = vmatprep.subr.bf16.mxu0 0
      %1434 = vmatpush1.bf16.msra.mxu0 0
      %1435 = vmatprep.subr.bf16.mxu0 0
      %1436 = vmatpush1.bf16.msra.mxu0 0
      %1437 = vmatprep.subr.bf16.mxu0 0
      %1438 = vmatpush1.bf16.msra.mxu0 0
      %1439 = vmatprep.subr.bf16.mxu0 0
      %1440 = vmatpush1.bf16.msra.mxu0 0
      %1441 = vmatprep.subr.bf16.mxu0 0
      %1442 = vmatpush1.bf16.msra.mxu0 0
      %1443 = vmatprep.subr.bf16.mxu0 0
      %1444 = vmatpush1.bf16.msra.mxu0 0
      %1445 = vmatprep.subr.bf16.mxu0 0
      %1446 = vmatpush1.bf16.msra.mxu0 0
      %1447 = vmatprep.subr.bf16.mxu0 0
      %1448 = vmatpush1.bf16.msra.mxu0 0
      %1449 = vmatprep.subr.bf16.mxu0 0
      %1450 = vmatpush1.bf16.msra.mxu0 0
      %1451 = vmatprep.subr.bf16.mxu0 0
      %1452 = vmatpush1.bf16.msra.mxu0 0
      %1453 = vmatprep.subr.bf16.mxu0 0
      %1454 = vmatpush1.bf16.msra.mxu0 0
      %1455 = vmatprep.subr.bf16.mxu0 0
      %1456 = vmatpush1.bf16.msra.mxu0 0
      %1457 = vmatprep.subr.bf16.mxu0 0
      %1458 = vmatpush1.bf16.msra.mxu0 0
      %1459 = vmatprep.subr.bf16.mxu0 0
      %1460 = vmatpush1.bf16.msra.mxu0 0
      %1461 = vmatprep.mubr.bf16.mxu0 0
      %1462 = vmatmul.mubr.bf16.gmra.mrb[0].mxu0 %v1424
      %v1463 = vpop.f32.mrb[0].mxu0
      %v1464 = vadd.f32 0.0, %v1463
      %v1465 = vpop.f32.mrb[0].mxu0
      %v1466 = vpop.f32.mrb[0].mxu0
      %v1467 = vpop.f32.mrb[0].mxu0
      %1468 = vdwg.mxu0
      %v1469 = vadd.f32 %v1405, %v1464
      %v1470 = vld [vmem:[%s185] sm:$0x3]
      %v1471 = vld [vmem:[%s1] sm:$0xf]
      %v1473 = vunpack.c.l.b16 %v1471
      %v1474 = vpack.c.b16 %v1473, %v1473
      %1475 = vrot.lane.b32.xlu0 %v1474, 44
      %v1476 = vpop.permute.xlu0 %1475
      %v1479 = vunpack.c.l.s4 1983009808
      %v1480 = vunpack.c.0.s8 %v1479
      %v1481 = vlaneseq
      %v1482 = vshrl.u32 %v1481, 7
      %v1483 = vsub.s32 %v1480, %v1482
      %v1484 = vrot.slane %v1470, %v1483
      %1485 = vrot.lane.b32.xlu0 %v1484, 108
      %v1486 = vpop.permute.xlu0 %1485
      %v1488 = vsel %vm192, %v1476, 0
      %v1491 = vsel %vm196, %v1486, 0
      %1493 = vmatprep.subr.bf16.mxu0 0
      %1494 = vmatpush1.bf16.msra.mxu0 %v1491
      %1495 = vmatprep.subr.bf16.mxu0 0
      %1496 = vmatpush1.bf16.msra.mxu0 0
      %1497 = vmatprep.subr.bf16.mxu0 0
      %1498 = vmatpush1.bf16.msra.mxu0 0
      %1499 = vmatprep.subr.bf16.mxu0 0
      %1500 = vmatpush1.bf16.msra.mxu0 0
      %1501 = vmatprep.subr.bf16.mxu0 0
      %1502 = vmatpush1.bf16.msra.mxu0 0
      %1503 = vmatprep.subr.bf16.mxu0 0
      %1504 = vmatpush1.bf16.msra.mxu0 0
      %1505 = vmatprep.subr.bf16.mxu0 0
      %1506 = vmatpush1.bf16.msra.mxu0 0
      %1507 = vmatprep.subr.bf16.mxu0 0
      %1508 = vmatpush1.bf16.msra.mxu0 0
      %1509 = vmatprep.subr.bf16.mxu0 0
      %1510 = vmatpush1.bf16.msra.mxu0 0
      %1511 = vmatprep.subr.bf16.mxu0 0
      %1512 = vmatpush1.bf16.msra.mxu0 0
      %1513 = vmatprep.subr.bf16.mxu0 0
      %1514 = vmatpush1.bf16.msra.mxu0 0
      %1515 = vmatprep.subr.bf16.mxu0 0
      %1516 = vmatpush1.bf16.msra.mxu0 0
      %1517 = vmatprep.subr.bf16.mxu0 0
      %1518 = vmatpush1.bf16.msra.mxu0 0
      %1519 = vmatprep.subr.bf16.mxu0 0
      %1520 = vmatpush1.bf16.msra.mxu0 0
      %1521 = vmatprep.subr.bf16.mxu0 0
      %1522 = vmatpush1.bf16.msra.mxu0 0
      %1523 = vmatprep.subr.bf16.mxu0 0
      %1524 = vmatpush1.bf16.msra.mxu0 0
      %1525 = vmatprep.mubr.bf16.mxu0 0
      %1526 = vmatmul.mubr.bf16.gmra.mrb[0].mxu0 %v1488
      %v1527 = vpop.f32.mrb[0].mxu0
      %v1528 = vadd.f32 0.0, %v1527
      %v1529 = vpop.f32.mrb[0].mxu0
      %v1530 = vpop.f32.mrb[0].mxu0
      %v1531 = vpop.f32.mrb[0].mxu0
      %1532 = vdwg.mxu0
      %v1533 = vadd.f32 %v1469, %v1528
      %v1534 = vld [vmem:[%s176] sm:$0x3]
      %v1535 = vld [vmem:[%s1] sm:$0xf]
      %v1537 = vunpack.c.l.b16 %v1535
      %v1538 = vpack.c.b16 %v1537, %v1537
      %1539 = vrot.lane.b32.xlu0 %v1538, 40
      %v1540 = vpop.permute.xlu0 %1539
      %v1543 = vunpack.c.l.s4 1983009808
      %v1544 = vunpack.c.0.s8 %v1543
      %v1545 = vlaneseq
      %v1546 = vshrl.u32 %v1545, 7
      %v1547 = vsub.s32 %v1544, %v1546
      %v1548 = vrot.slane %v1534, %v1547
      %1549 = vrot.lane.b32.xlu0 %v1548, 107
      %v1550 = vpop.permute.xlu0 %1549
      %v1552 = vsel %vm192, %v1540, 0
      %v1555 = vsel %vm196, %v1550, 0
      %1557 = vmatprep.subr.bf16.mxu0 0
      %1558 = vmatpush1.bf16.msra.mxu0 %v1555
      %1559 = vmatprep.subr.bf16.mxu0 0
      %1560 = vmatpush1.bf16.msra.mxu0 0
      %1561 = vmatprep.subr.bf16.mxu0 0
      %1562 = vmatpush1.bf16.msra.mxu0 0
      %1563 = vmatprep.subr.bf16.mxu0 0
      %1564 = vmatpush1.bf16.msra.mxu0 0
      %1565 = vmatprep.subr.bf16.mxu0 0
      %1566 = vmatpush1.bf16.msra.mxu0 0
      %1567 = vmatprep.subr.bf16.mxu0 0
      %1568 = vmatpush1.bf16.msra.mxu0 0
      %1569 = vmatprep.subr.bf16.mxu0 0
      %1570 = vmatpush1.bf16.msra.mxu0 0
      %1571 = vmatprep.subr.bf16.mxu0 0
      %1572 = vmatpush1.bf16.msra.mxu0 0
      %1573 = vmatprep.subr.bf16.mxu0 0
      %1574 = vmatpush1.bf16.msra.mxu0 0
      %1575 = vmatprep.subr.bf16.mxu0 0
      %1576 = vmatpush1.bf16.msra.mxu0 0
      %1577 = vmatprep.subr.bf16.mxu0 0
      %1578 = vmatpush1.bf16.msra.mxu0 0
      %1579 = vmatprep.subr.bf16.mxu0 0
      %1580 = vmatpush1.bf16.msra.mxu0 0
      %1581 = vmatprep.subr.bf16.mxu0 0
      %1582 = vmatpush1.bf16.msra.mxu0 0
      %1583 = vmatprep.subr.bf16.mxu0 0
      %1584 = vmatpush1.bf16.msra.mxu0 0
      %1585 = vmatprep.subr.bf16.mxu0 0
      %1586 = vmatpush1.bf16.msra.mxu0 0
      %1587 = vmatprep.subr.bf16.mxu0 0
      %1588 = vmatpush1.bf16.msra.mxu0 0
      %1589 = vmatprep.mubr.bf16.mxu0 0
      %1590 = vmatmul.mubr.bf16.gmra.mrb[0].mxu0 %v1552
      %v1591 = vpop.f32.mrb[0].mxu0
      %v1592 = vadd.f32 0.0, %v1591
      %v1593 = vpop.f32.mrb[0].mxu0
      %v1594 = vpop.f32.mrb[0].mxu0
      %v1595 = vpop.f32.mrb[0].mxu0
      %1596 = vdwg.mxu0
      %v1597 = vadd.f32 %v1533, %v1592
      %v1598 = vld [vmem:[%s185] sm:$0x3]
      %v1599 = vld [vmem:[%s1] sm:$0xf]
      %v1601 = vunpack.c.l.b16 %v1599
      %v1602 = vpack.c.b16 %v1601, %v1601
      %1603 = vrot.lane.b32.xlu0 %v1602, 36
      %v1604 = vpop.permute.xlu0 %1603
      %v1607 = vunpack.c.l.s4 1983009808
      %v1608 = vunpack.c.0.s8 %v1607
      %v1609 = vlaneseq
      %v1610 = vshrl.u32 %v1609, 7
      %v1611 = vsub.s32 %v1608, %v1610
      %v1612 = vrot.slane %v1598, %v1611
      %1613 = vrot.lane.b32.xlu0 %v1612, 107
      %v1614 = vpop.permute.xlu0 %1613
      %v1616 = vsel %vm192, %v1604, 0
      %v1619 = vsel %vm196, %v1614, 0
      %1621 = vmatprep.subr.bf16.mxu0 0
      %1622 = vmatpush1.bf16.msra.mxu0 %v1619
      %1623 = vmatprep.subr.bf16.mxu0 0
      %1624 = vmatpush1.bf16.msra.mxu0 0
      %1625 = vmatprep.subr.bf16.mxu0 0
      %1626 = vmatpush1.bf16.msra.mxu0 0
      %1627 = vmatprep.subr.bf16.mxu0 0
      %1628 = vmatpush1.bf16.msra.mxu0 0
      %1629 = vmatprep.subr.bf16.mxu0 0
      %1630 = vmatpush1.bf16.msra.mxu0 0
      %1631 = vmatprep.subr.bf16.mxu0 0
      %1632 = vmatpush1.bf16.msra.mxu0 0
      %1633 = vmatprep.subr.bf16.mxu0 0
      %1634 = vmatpush1.bf16.msra.mxu0 0
      %1635 = vmatprep.subr.bf16.mxu0 0
      %1636 = vmatpush1.bf16.msra.mxu0 0
      %1637 = vmatprep.subr.bf16.mxu0 0
      %1638 = vmatpush1.bf16.msra.mxu0 0
      %1639 = vmatprep.subr.bf16.mxu0 0
      %1640 = vmatpush1.bf16.msra.mxu0 0
      %1641 = vmatprep.subr.bf16.mxu0 0
      %1642 = vmatpush1.bf16.msra.mxu0 0
      %1643 = vmatprep.subr.bf16.mxu0 0
      %1644 = vmatpush1.bf16.msra.mxu0 0
      %1645 = vmatprep.subr.bf16.mxu0 0
      %1646 = vmatpush1.bf16.msra.mxu0 0
      %1647 = vmatprep.subr.bf16.mxu0 0
      %1648 = vmatpush1.bf16.msra.mxu0 0
      %1649 = vmatprep.subr.bf16.mxu0 0
      %1650 = vmatpush1.bf16.msra.mxu0 0
      %1651 = vmatprep.subr.bf16.mxu0 0
      %1652 = vmatpush1.bf16.msra.mxu0 0
      %1653 = vmatprep.mubr.bf16.mxu0 0
      %1654 = vmatmul.mubr.bf16.gmra.mrb[0].mxu0 %v1616
      %v1655 = vpop.f32.mrb[0].mxu0
      %v1656 = vadd.f32 0.0, %v1655
      %v1657 = vpop.f32.mrb[0].mxu0
      %v1658 = vpop.f32.mrb[0].mxu0
      %v1659 = vpop.f32.mrb[0].mxu0
      %1660 = vdwg.mxu0
      %v1661 = vadd.f32 %v1597, %v1656
      %v1662 = vld [vmem:[%s176] sm:$0x3]
      %v1663 = vld [vmem:[%s1] sm:$0xf]
      %v1665 = vunpack.c.l.b16 %v1663
      %v1666 = vpack.c.b16 %v1665, %v1665
      %1667 = vrot.lane.b32.xlu0 %v1666, 32
      %v1668 = vpop.permute.xlu0 %1667
      %v1671 = vunpack.c.l.s4 1983009808
      %v1672 = vunpack.c.0.s8 %v1671
      %v1673 = vlaneseq
      %v1674 = vshrl.u32 %v1673, 7
      %v1675 = vsub.s32 %v1672, %v1674
      %v1676 = vrot.slane %v1662, %v1675
      %1677 = vrot.lane.b32.xlu0 %v1676, 106
      %v1678 = vpop.permute.xlu0 %1677
      %v1680 = vsel %vm192, %v1668, 0
      %v1683 = vsel %vm196, %v1678, 0
      %1685 = vmatprep.subr.bf16.mxu0 0
      %1686 = vmatpush1.bf16.msra.mxu0 %v1683
      %1687 = vmatprep.subr.bf16.mxu0 0
      %1688 = vmatpush1.bf16.msra.mxu0 0
      %1689 = vmatprep.subr.bf16.mxu0 0
      %1690 = vmatpush1.bf16.msra.mxu0 0
      %1691 = vmatprep.subr.bf16.mxu0 0
      %1692 = vmatpush1.bf16.msra.mxu0 0
      %1693 = vmatprep.subr.bf16.mxu0 0
      %1694 = vmatpush1.bf16.msra.mxu0 0
      %1695 = vmatprep.subr.bf16.mxu0 0
      %1696 = vmatpush1.bf16.msra.mxu0 0
      %1697 = vmatprep.subr.bf16.mxu0 0
      %1698 = vmatpush1.bf16.msra.mxu0 0
      %1699 = vmatprep.subr.bf16.mxu0 0
      %1700 = vmatpush1.bf16.msra.mxu0 0
      %1701 = vmatprep.subr.bf16.mxu0 0
      %1702 = vmatpush1.bf16.msra.mxu0 0
      %1703 = vmatprep.subr.bf16.mxu0 0
      %1704 = vmatpush1.bf16.msra.mxu0 0
      %1705 = vmatprep.subr.bf16.mxu0 0
      %1706 = vmatpush1.bf16.msra.mxu0 0
      %1707 = vmatprep.subr.bf16.mxu0 0
      %1708 = vmatpush1.bf16.msra.mxu0 0
      %1709 = vmatprep.subr.bf16.mxu0 0
      %1710 = vmatpush1.bf16.msra.mxu0 0
      %1711 = vmatprep.subr.bf16.mxu0 0
      %1712 = vmatpush1.bf16.msra.mxu0 0
      %1713 = vmatprep.subr.bf16.mxu0 0
      %1714 = vmatpush1.bf16.msra.mxu0 0
      %1715 = vmatprep.subr.bf16.mxu0 0
      %1716 = vmatpush1.bf16.msra.mxu0 0
      %1717 = vmatprep.mubr.bf16.mxu0 0
      %1718 = vmatmul.mubr.bf16.gmra.mrb[0].mxu0 %v1680
      %v1719 = vpop.f32.mrb[0].mxu0
      %v1720 = vadd.f32 0.0, %v1719
      %v1721 = vpop.f32.mrb[0].mxu0
      %v1722 = vpop.f32.mrb[0].mxu0
      %v1723 = vpop.f32.mrb[0].mxu0
      %1724 = vdwg.mxu0
      %v1725 = vadd.f32 %v1661, %v1720
      %1727 = vset.pattern.permute.xlu0 0
      %1728 = vperm.xlu0 %1727, %v182
      %v1729 = vpop.permute.xlu0 %1728
      %v1731 = vadd.f32 %v1725, %v1729
      %v1732 = vmax.f32 %v1731, 0.0
      %vm1733 = vcmask 654336
      %1734 = vst.msk [vmem:[%s180] sm:$0xff] %vm1733, %v1732
      %p1735 = scmp.lt.s32.totalorder %s18, 1
      %s1736 = scalar_select %p1735, %s18, 1
      %s1737 = smul.addr %s1736, 8
      %s1738 = scalar_lea.vmem %s3, %s1737
      // Predicated region
      $region33: #{down_conv_layer.1} parent=31 // pred_check
        %p1739 = pneg %p112
      $region34: #{down_conv_layer.1} parent=31 // pred_check_branch
        %1741 = sbr.rel (%p1739) target = $region36
      $region35: #{down_conv_layer.1} parent=31 // pred_region
        _
      $region36: #{down_conv_layer.1} parent=31 // pred_fallthru
        _
    $region32: #{down_conv_layer.1} parent=5 // pred_fallthru
      _
    %p1742 = scmp.le.s32.totalorder 2, %s9
    // Predicated region
    $region37: #{down_conv_layer.1} parent=5 // pred_check
      %p1743 = pneg %p1742
    $region38: #{down_conv_layer.1} parent=5 // pred_check_branch
      %1745 = sbr.rel (%p1743) target = $region40
    $region39: #{down_conv_layer.1} parent=5 // pred_region
      %s1746 = ssub.s32 %s9, 2
      // Predicated region
      $region41: #{down_conv_layer.1} parent=39 // pred_check
        %p1747 = pneg %p118
      $region42: #{down_conv_layer.1} parent=39 // pred_check_branch
        %1749 = sbr.rel (%p1747) target = $region44
      $region43: #{down_conv_layer.1} parent=39 // pred_region
        %p1750 = scmp.lt.s32.totalorder %s20, 1
        %s1751 = scalar_select %p1750, %s20, 1
        %s1752 = smul.addr %s1751, 8
        %s1753 = scalar_lea.vmem %s3, %s1752
      $region44: #{down_conv_layer.1} parent=39 // pred_fallthru
        _
    $region40: #{down_conv_layer.1} parent=5 // pred_fallthru
      _
  $region6: #{down_conv_layer.1} parent=0 // loop_footer
    %s13 = sadd.s32 1, %s9
  $region7: #{down_conv_layer.1} parent=0 // loop_footer_branch
    %8 = sbr.rel target = $region3
  $region8: #{down_conv_layer.1} parent=0 // loop_exit
    _

</llo_original>
